<compile_context>
chip_gen: v7x
topology: tpu7x:2x2x1
jax: 0.10.0
libtpu: 0.0.40
codegen_flags: <defaults>
</compile_context>

<pallas_src>
import functools

import jax
import jax.numpy as jnp
from jax.experimental import pallas as pl
from jax.experimental.pallas import tpu as pltpu


# --------------------------------------------------------------------------- #
# Kernel
# --------------------------------------------------------------------------- #
def _bilinear_kernel(bias_ref, x1_ref, x2t_ref, w_ref, o_ref, m_ref, *, x1_first):
    """grid = (O_blocks, N_blocks).  One step: Bn batch elements x To channels.

    x1_ref : (Bn, L1, D1)   compute dtype
    x2t_ref: (Bn, D2, L2)   compute dtype (x2 pre-transposed in the wrapper)
    w_ref  : (1, To*D1, D2) compute dtype; rows [t*D1:(t+1)*D1] = W_eff[:, c, :]
    bias_ref: (1, To*L1, 1) or (1, 1, To*L2) float32 (pre-broadcast in wrapper)
    o_ref  : (Bn, To*L1, L2) or (Bn, L1, To*L2)
    m_ref  : VMEM scratch, (To*L1, D2) or (D1, To*L2), compute dtype
    """
    bn = x1_ref.shape[0]
    l1 = x1_ref.shape[1]
    d1 = x1_ref.shape[2]
    l2 = x2t_ref.shape[2]
    to_block = w_ref.shape[1] // d1

    bias_blk = bias_ref[0]                  # (To*L1, 1) or (1, To*L2), f32

    for nb in range(bn):                    # static: Bn is small by construction
        x1 = x1_ref[nb]                     # (L1, D1)
        x2t = x2t_ref[nb]                   # (D2, L2)

        if x1_first:
            # ---- "x1 first": Q_t = x1 @ W_t, then one wide (To*L1,D2)@(D2,L2) ----
            for t in range(to_block):
                w_t = w_ref[0, pl.ds(t * d1, d1), :]                       # (D1, D2)
                q_t = jnp.dot(x1, w_t, preferred_element_type=jnp.float32)  # (L1, D2)
                m_ref[pl.ds(t * l1, l1), :] = q_t.astype(m_ref.dtype)
            s = jnp.dot(m_ref[...], x2t,
                        preferred_element_type=jnp.float32)                # (To*L1, L2)
        else:
            # ---- "x2 first": P_t = W_t @ x2^T, then one wide (L1,D1)@(D1,To*L2) ----
            for t in range(to_block):
                w_t = w_ref[0, pl.ds(t * d1, d1), :]                       # (D1, D2)
                p_t = jnp.dot(w_t, x2t, preferred_element_type=jnp.float32)  # (D1, L2)
                m_ref[:, pl.ds(t * l2, l2)] = p_t.astype(m_ref.dtype)
            s = jnp.dot(x1, m_ref[...],
                        preferred_element_type=jnp.float32)                # (L1, To*L2)

        # Single vectorized bias add + one lane-dense store of the whole slab.
        o_ref[nb] = (s + bias_blk).astype(o_ref.dtype)


# --------------------------------------------------------------------------- #
# Block-size selection (VMEM aware, per TPU generation)
# --------------------------------------------------------------------------- #
def _round_up(x, m):
    return ((x + m - 1) // m) * m


def _sublane(dtype):
    # rows per 32-bit sublane tile: 8 (4-byte), 16 (2-byte), 32 (1-byte).
    return 8 * (4 // jnp.dtype(dtype).itemsize)


def _block_vmem_bytes(shape, dtype):
    """Lane/sublane-padded VMEM footprint of a 2D block (minor -> 128 lanes)."""
    shape = tuple(shape)
    return (_round_up(shape[-2], _sublane(dtype))
            * _round_up(shape[-1], 128) * jnp.dtype(dtype).itemsize)


def _divisors_desc(n):
    return [d for d in range(n, 0, -1) if n % d == 0]


def _vmem_capacity_bytes():
    """Per-core VMEM capacity; falls back to the most restrictive modern part."""
    try:
        cap = getattr(pltpu.get_tpu_info(), "vmem_capacity_bytes", None)
        if cap:
            return int(cap)
    except Exception:
        pass
    return 64 * 1024 * 1024      # v7x per-TensorCore VMEM


def _choose_blocks(N, O, L1, L2, D1, D2, *, x1_first, compute_dtype, out_dtype,
                   budget_bytes, to_block=None, batch_block=None):
    """Pick (to_block, batch_block): as large as possible while the padded,
    double-buffered working set fits the VMEM budget; nudged so at least one
    parallel grid axis splits evenly across v7x's two TensorCores."""
    w_sub = _sublane(compute_dtype)
    o_sub = _sublane(out_dtype)

    def shape_ok(to):
        # Keep auto-blocked axes compatible with the (8,128)-style BlockSpec rule.
        if to == O:
            return True
        if (to * D1) % w_sub:
            return False
        if x1_first:
            return (to * L1) % o_sub == 0
        return (to * L2) % 128 == 0

    def vmem_bytes(to, bn):
        w = _block_vmem_bytes((to * D1, D2), compute_dtype)
        xa = bn * _block_vmem_bytes((L1, D1), compute_dtype)
        xb = bn * _block_vmem_bytes((D2, L2), compute_dtype)
        if x1_first:
            m = _block_vmem_bytes((to * L1, D2), compute_dtype)
            ob = bn * _block_vmem_bytes((to * L1, L2), out_dtype)
            bb = _block_vmem_bytes((to * L1, 1), jnp.float32)
        else:
            m = _block_vmem_bytes((D1, to * L2), compute_dtype)
            ob = bn * _block_vmem_bytes((L1, to * L2), out_dtype)
            bb = _block_vmem_bytes((1, to * L2), jnp.float32)
        # Every pipelined operand is double-buffered; the scratch is single.
        return 2 * (w + xa + xb + ob + bb) + m

    if to_block is not None:
        assert O % to_block == 0, (O, to_block)
        to_cands = [to_block]
    else:
        to_cands = [d for d in _divisors_desc(O) if shape_ok(d) and d <= 256]
        if not to_cands:
            to_cands = [O]
    if batch_block is not None:
        assert N % batch_block == 0, (N, batch_block)
        bn_cands = [batch_block]
    else:
        bn_cands = _divisors_desc(N)

    choice = None
    for to in to_cands:
        for bn in bn_cands:
            if to * bn > 512:            # bound the statically-unrolled loops
                continue
            if vmem_bytes(to, bn) <= budget_bytes:
                choice = (to, bn)
                break
        if choice is not None:
            break
    if choice is None:
        choice = (to_cands[-1], bn_cands[-1])
    to, bn = choice

    # v7x megacore: 2 TensorCores share the "parallel" grid axes; make sure at
    # least one axis has an even extent (>= 2) so a core is not left idle.
    if to_block is None and batch_block is None:
        if (N // bn) % 2 and (O // to) % 2:
            if N % 2 == 0:
                for d in _divisors_desc(N // 2):
                    if vmem_bytes(to, d) <= budget_bytes:
                        bn = d
                        break
            elif O % 2 == 0:
                for d in _divisors_desc(O // 2):
                    if shape_ok(d) and vmem_bytes(d, bn) <= budget_bytes:
                        to = d
                        break
    return to, bn


# --------------------------------------------------------------------------- #
# Wrapper
# --------------------------------------------------------------------------- #
def bilinear_forward(x1, x2, weight, bias=None, *, mxu_dtype=jnp.bfloat16,
                     x1_first=None, to_block=None, batch_block=None,
                     transpose_output=True):
    """Pallas equivalent of Bilinear.forward.

    x1: (N, L1, D1), x2: (N, L2, D2), weight: (D1, D2, O), bias: (O,) or None.
    Returns (N, L1, L2, O) (PyTorch layout).

    mxu_dtype: dtype the MXU operands are cast to.  bfloat16 (default) is the
      native MXU fast path (f32 accumulation, f32 output); pass jnp.float32
      for bit-accurate f32 compute.
    x1_first: contraction order; None = pick the cheaper one for the shapes.
    transpose_output=False skips the final HBM relayout pass and returns the
      kernel-native layout: (N, O, L1, L2) for the x1-first order,
      (N, L1, O, L2) for the x2-first order.
    """
    N, L1, D1 = x1.shape
    N2, L2, D2 = x2.shape
    assert N2 == N
    assert weight.shape[0] == D1 and weight.shape[1] == D2
    O = weight.shape[-1]

    out_dtype = jnp.result_type(x1.dtype, x2.dtype, weight.dtype)
    compute_dtype = jnp.dtype(mxu_dtype)
    if bias is None:
        bias = jnp.zeros((O,), dtype=jnp.float32)
    bias = bias.astype(jnp.float32)

    # Contraction order: MXU work per output element is
    #   x2-first: D1*L2*(D2 + L1)      x1-first: L1*D2*(D1 + L2)
    if x1_first is None:
        x1_first = L1 * D2 * (D1 + L2) < D1 * L2 * (D2 + L1)

    vmem_cap = _vmem_capacity_bytes()
    budget = int(0.45 * vmem_cap)                              # block selection
    vmem_limit = min(int(0.80 * vmem_cap), 100 * 1024 * 1024)  # scoped limit

    to_block, batch_block = _choose_blocks(
        N, O, L1, L2, D1, D2, x1_first=x1_first, compute_dtype=compute_dtype,
        out_dtype=out_dtype, budget_bytes=budget,
        to_block=to_block, batch_block=batch_block)
    o_blocks = O // to_block
    n_blocks = N // batch_block

    # ---- one-time wrapper-side layout work ----
    # PyTorch's weight.view() reinterpretation: W_eff[a, o, b].
    w_eff = weight.reshape(D1, O, D2)
    # (O_blocks, To*D1, D2): rows [t*D1:(t+1)*D1] of block ob = W_eff[:, ob*To+t, :]
    w_kernel = jnp.transpose(w_eff, (1, 0, 2)).reshape(
        o_blocks, to_block * D1, D2).astype(compute_dtype)
    # Pre-transpose x2 once so the kernel never transposes.
    x2t = jnp.transpose(x2, (0, 2, 1)).astype(compute_dtype)   # (N, D2, L2)
    x1c = x1.astype(compute_dtype)

    if x1_first:
        # Output slab rows are (t, i); bias is broadcast along that row axis.
        bias_blk = jnp.repeat(bias, L1).reshape(o_blocks, to_block * L1, 1)
        bias_spec = pl.BlockSpec((1, to_block * L1, 1), lambda ob, nb: (ob, 0, 0))
        out_shape = jax.ShapeDtypeStruct((N, O * L1, L2), out_dtype)
        out_spec = pl.BlockSpec((batch_block, to_block * L1, L2),
                                lambda ob, nb: (nb, ob, 0))
        scratch = pltpu.VMEM((to_block * L1, D2), compute_dtype)
        flops = 2 * N * O * L1 * D2 * (D1 + L2)
    else:
        # Output slab columns are (t, j); bias is broadcast along that column axis.
        bias_blk = jnp.repeat(bias, L2).reshape(o_blocks, 1, to_block * L2)
        bias_spec = pl.BlockSpec((1, 1, to_block * L2), lambda ob, nb: (ob, 0, 0))
        out_shape = jax.ShapeDtypeStruct((N, L1, O * L2), out_dtype)
        out_spec = pl.BlockSpec((batch_block, L1, to_block * L2),
                                lambda ob, nb: (nb, 0, ob))
        scratch = pltpu.VMEM((D1, to_block * L2), compute_dtype)
        flops = 2 * N * O * D1 * L2 * (D2 + L1)

    csize = jnp.dtype(compute_dtype).itemsize
    bytes_accessed = int(csize * (x1c.size + x2t.size + w_kernel.size)
                         + 4 * bias_blk.size
                         + jnp.dtype(out_dtype).itemsize * N * O * L1 * L2)

    out = pl.pallas_call(
        functools.partial(_bilinear_kernel, x1_first=x1_first),
        out_shape=out_shape,
        grid=(o_blocks, n_blocks),
        in_specs=[
            bias_spec,                                                        # bias
            pl.BlockSpec((batch_block, L1, D1), lambda ob, nb: (nb, 0, 0)),   # x1
            pl.BlockSpec((batch_block, D2, L2), lambda ob, nb: (nb, 0, 0)),   # x2^T
            pl.BlockSpec((1, to_block * D1, D2), lambda ob, nb: (ob, 0, 0)),  # weight
        ],
        out_specs=out_spec,
        scratch_shapes=[scratch],
        compiler_params=pltpu.CompilerParams(
            dimension_semantics=("parallel", "parallel"),
            vmem_limit_bytes=vmem_limit),
        cost_estimate=pl.CostEstimate(flops=flops, transcendentals=0,
                                      bytes_accessed=bytes_accessed),
    )(bias_blk, x1c, x2t, w_kernel)

    if x1_first:
        out = out.reshape(N, O, L1, L2)
        if transpose_output:
            out = jnp.transpose(out, (0, 2, 3, 1))    # (N, L1, L2, O)
    else:
        out = out.reshape(N, L1, O, L2)
        if transpose_output:
            out = jnp.transpose(out, (0, 1, 3, 2))    # (N, L1, L2, O)
    return out


# --------------------------------------------------------------------------- #
# Reference + self-test
# --------------------------------------------------------------------------- #
def _reference(x1, x2, weight, bias):
    """Pure-JAX transcription of the PyTorch forward (same views/bmm/transposes)."""
    N, L1, D1 = x1.shape
    _, L2, D2 = x2.shape
    O = weight.shape[-1]
    inter = jnp.dot(x1.reshape(-1, D1), weight.reshape(D1, D2 * O))     # (N*L1, D2*O)
    out = jnp.einsum('npd,njd->npj', inter.reshape(N, L1 * O, D2), x2)  # (N, L1*O, L2)
    out = out.reshape(N, L1, O, L2).transpose(0, 1, 3, 2)               # (N, L1, L2, O)
    return out + bias


if __name__ == "__main__":
    N, L1, L2, D1, D2, O = 2, 16, 128, 64, 32, 16

    key = jax.random.PRNGKey(0)
    k1, k2, k3, k4 = jax.random.split(key, 4)
    x1 = jax.random.normal(k1, (N, L1, D1), dtype=jnp.float32)
    x2 = jax.random.normal(k2, (N, L2, D2), dtype=jnp.float32)
    # The PyTorch module zero-inits the weight (bias is left uninitialized);
    # use small deterministic random values so the kernel computes something
    # non-trivial.
    weight = 0.1 * jax.random.normal(k3, (D1, D2, O), dtype=jnp.float32)
    bias = 0.1 * jax.random.normal(k4, (O,), dtype=jnp.float32)

    ref = _reference(x1, x2, weight, bias)

    # Exact-precision path (f32 MXU operands), auto order / auto blocking.
    out_f32 = jax.block_until_ready(
        bilinear_forward(x1, x2, weight, bias, mxu_dtype=jnp.float32))
    assert out_f32.shape == (N, L1, L2, O), out_f32.shape
    assert jnp.allclose(out_f32, ref, atol=2e-3, rtol=2e-3), float(
        jnp.max(jnp.abs(out_f32 - ref)))

    # Default fast path: bf16 MXU operands, f32 accumulation (looser tolerance).
    out_bf16 = jax.block_until_ready(bilinear_forward(x1, x2, weight, bias))
    assert out_bf16.shape == (N, L1, L2, O), out_bf16.shape
    assert jnp.allclose(out_bf16, ref, atol=2.5e-1, rtol=5e-2), float(
        jnp.max(jnp.abs(out_bf16 - ref)))

    # Exercise the other contraction order + explicit channel/batch blocking.
    out_alt = jax.block_until_ready(
        bilinear_forward(x1, x2, weight, bias, mxu_dtype=jnp.float32,
                         x1_first=False, to_block=8, batch_block=1))
    assert jnp.allclose(out_alt, ref, atol=2e-3, rtol=2e-3), float(
        jnp.max(jnp.abs(out_alt - ref)))

    print("KERNEL_OK")
</pallas_src>

<mosaic_0001>
module attributes {stable_mosaic.version = 11 : i64} {
  func.func @_bilinear_kernel(%arg0: i32, %arg1: i32, %arg2: memref<1x256x1xf32, #tpu.memory_space<vmem>>, %arg3: memref<1x16x64xf32, #tpu.memory_space<vmem>>, %arg4: memref<1x32x128xf32, #tpu.memory_space<vmem>>, %arg5: memref<1x1024x32xf32, #tpu.memory_space<vmem>>, %arg6: memref<1x256x128xf32, #tpu.memory_space<vmem>>, %arg7: memref<256x32xf32, #tpu.memory_space<vmem>>) attributes {dimension_semantics = [#tpu.dimension_semantics<parallel>, #tpu.dimension_semantics<parallel>], iteration_bounds = array<i64: 1, 2>, scalar_prefetch = 0 : i64, scratch_operands = 1 : i64, tpu.core_type = #tpu.core_type<tc>, window_params = [{transform_indices = @transform_0, window_bounds = array<i64: 1, 256, 1>}, {transform_indices = @transform_1, window_bounds = array<i64: 1, 16, 64>}, {transform_indices = @transform_2, window_bounds = array<i64: 1, 32, 128>}, {transform_indices = @transform_3, window_bounds = array<i64: 1, 1024, 32>}, {transform_indices = @transform_4, window_bounds = array<i64: 1, 256, 128>}]} {
    %c0 = arith.constant 0 : index
    %c0_0 = arith.constant 0 : index
    %c0_1 = arith.constant 0 : index
    %0 = vector.load %arg2[%c0, %c0_0, %c0_1] : memref<1x256x1xf32, #tpu.memory_space<vmem>>, vector<1x256x1xf32>
    %1 = vector.shape_cast %0 : vector<1x256x1xf32> to vector<256x1xf32>
    %c0_2 = arith.constant 0 : index
    %c0_3 = arith.constant 0 : index
    %c0_4 = arith.constant 0 : index
    %2 = vector.load %arg3[%c0_2, %c0_3, %c0_4] : memref<1x16x64xf32, #tpu.memory_space<vmem>>, vector<1x16x64xf32>
    %3 = vector.shape_cast %2 : vector<1x16x64xf32> to vector<16x64xf32>
    %c0_5 = arith.constant 0 : index
    %c0_6 = arith.constant 0 : index
    %c0_7 = arith.constant 0 : index
    %4 = vector.load %arg4[%c0_5, %c0_6, %c0_7] : memref<1x32x128xf32, #tpu.memory_space<vmem>>, vector<1x32x128xf32>
    %5 = vector.shape_cast %4 : vector<1x32x128xf32> to vector<32x128xf32>
    %c0_8 = arith.constant 0 : index
    %c0_9 = arith.constant 0 : index
    %c0_10 = arith.constant 0 : index
    %6 = vector.load %arg5[%c0_8, %c0_9, %c0_10] : memref<1x1024x32xf32, #tpu.memory_space<vmem>>, vector<1x64x32xf32>
    %7 = vector.shape_cast %6 : vector<1x64x32xf32> to vector<64x32xf32>
    %cst = arith.constant dense<0.000000e+00> : vector<16x32xf32>
    %8 = tpu.matmul %3, %7, %cst {dimension_numbers = #tpu.dot_dimension_numbers<[1], [0], [0], [1], [0, 0, 1, 1], [], []>} : vector<16x64xf32>, vector<64x32xf32>, vector<16x32xf32> -> vector<16x32xf32>
    %c0_11 = arith.constant 0 : index
    %c0_12 = arith.constant 0 : index
    %9 = vector.load %arg7[%c0_11, %c0_12] : memref<256x32xf32, #tpu.memory_space<vmem>>, vector<16x32xf32>
    tpu.vector_store %arg7[%c0_11, %c0_12], %8 {strides = array<i32>} : memref<256x32xf32, #tpu.memory_space<vmem>>, vector<16x32xf32>,
    %c0_13 = arith.constant 0 : index
    %c64 = arith.constant 64 : index
    %c0_14 = arith.constant 0 : index
    %10 = vector.load %arg5[%c0_13, %c64, %c0_14] : memref<1x1024x32xf32, #tpu.memory_space<vmem>>, vector<1x64x32xf32>
    %11 = vector.shape_cast %10 : vector<1x64x32xf32> to vector<64x32xf32>
    %cst_15 = arith.constant dense<0.000000e+00> : vector<16x32xf32>
    %12 = tpu.matmul %3, %11, %cst_15 {dimension_numbers = #tpu.dot_dimension_numbers<[1], [0], [0], [1], [0, 0, 1, 1], [], []>} : vector<16x64xf32>, vector<64x32xf32>, vector<16x32xf32> -> vector<16x32xf32>
    %c16 = arith.constant 16 : index
    %c0_16 = arith.constant 0 : index
    %13 = vector.load %arg7[%c16, %c0_16] : memref<256x32xf32, #tpu.memory_space<vmem>>, vector<16x32xf32>
    tpu.vector_store %arg7[%c16, %c0_16], %12 {strides = array<i32>} : memref<256x32xf32, #tpu.memory_space<vmem>>, vector<16x32xf32>,
    %c0_17 = arith.constant 0 : index
    %c128 = arith.constant 128 : index
    %c0_18 = arith.constant 0 : index
    %14 = vector.load %arg5[%c0_17, %c128, %c0_18] : memref<1x1024x32xf32, #tpu.memory_space<vmem>>, vector<1x64x32xf32>
    %15 = vector.shape_cast %14 : vector<1x64x32xf32> to vector<64x32xf32>
    %cst_19 = arith.constant dense<0.000000e+00> : vector<16x32xf32>
    %16 = tpu.matmul %3, %15, %cst_19 {dimension_numbers = #tpu.dot_dimension_numbers<[1], [0], [0], [1], [0, 0, 1, 1], [], []>} : vector<16x64xf32>, vector<64x32xf32>, vector<16x32xf32> -> vector<16x32xf32>
    %c32 = arith.constant 32 : index
    %c0_20 = arith.constant 0 : index
    %17 = vector.load %arg7[%c32, %c0_20] : memref<256x32xf32, #tpu.memory_space<vmem>>, vector<16x32xf32>
    tpu.vector_store %arg7[%c32, %c0_20], %16 {strides = array<i32>} : memref<256x32xf32, #tpu.memory_space<vmem>>, vector<16x32xf32>,
    %c0_21 = arith.constant 0 : index
    %c192 = arith.constant 192 : index
    %c0_22 = arith.constant 0 : index
    %18 = vector.load %arg5[%c0_21, %c192, %c0_22] : memref<1x1024x32xf32, #tpu.memory_space<vmem>>, vector<1x64x32xf32>
    %19 = vector.shape_cast %18 : vector<1x64x32xf32> to vector<64x32xf32>
    %cst_23 = arith.constant dense<0.000000e+00> : vector<16x32xf32>
    %20 = tpu.matmul %3, %19, %cst_23 {dimension_numbers = #tpu.dot_dimension_numbers<[1], [0], [0], [1], [0, 0, 1, 1], [], []>} : vector<16x64xf32>, vector<64x32xf32>, vector<16x32xf32> -> vector<16x32xf32>
    %c48 = arith.constant 48 : index
    %c0_24 = arith.constant 0 : index
    %21 = vector.load %arg7[%c48, %c0_24] : memref<256x32xf32, #tpu.memory_space<vmem>>, vector<16x32xf32>
    tpu.vector_store %arg7[%c48, %c0_24], %20 {strides = array<i32>} : memref<256x32xf32, #tpu.memory_space<vmem>>, vector<16x32xf32>,
    %c0_25 = arith.constant 0 : index
    %c256 = arith.constant 256 : index
    %c0_26 = arith.constant 0 : index
    %22 = vector.load %arg5[%c0_25, %c256, %c0_26] : memref<1x1024x32xf32, #tpu.memory_space<vmem>>, vector<1x64x32xf32>
    %23 = vector.shape_cast %22 : vector<1x64x32xf32> to vector<64x32xf32>
    %cst_27 = arith.constant dense<0.000000e+00> : vector<16x32xf32>
    %24 = tpu.matmul %3, %23, %cst_27 {dimension_numbers = #tpu.dot_dimension_numbers<[1], [0], [0], [1], [0, 0, 1, 1], [], []>} : vector<16x64xf32>, vector<64x32xf32>, vector<16x32xf32> -> vector<16x32xf32>
    %c64_28 = arith.constant 64 : index
    %c0_29 = arith.constant 0 : index
    %25 = vector.load %arg7[%c64_28, %c0_29] : memref<256x32xf32, #tpu.memory_space<vmem>>, vector<16x32xf32>
    tpu.vector_store %arg7[%c64_28, %c0_29], %24 {strides = array<i32>} : memref<256x32xf32, #tpu.memory_space<vmem>>, vector<16x32xf32>,
    %c0_30 = arith.constant 0 : index
    %c320 = arith.constant 320 : index
    %c0_31 = arith.constant 0 : index
    %26 = vector.load %arg5[%c0_30, %c320, %c0_31] : memref<1x1024x32xf32, #tpu.memory_space<vmem>>, vector<1x64x32xf32>
    %27 = vector.shape_cast %26 : vector<1x64x32xf32> to vector<64x32xf32>
    %cst_32 = arith.constant dense<0.000000e+00> : vector<16x32xf32>
    %28 = tpu.matmul %3, %27, %cst_32 {dimension_numbers = #tpu.dot_dimension_numbers<[1], [0], [0], [1], [0, 0, 1, 1], [], []>} : vector<16x64xf32>, vector<64x32xf32>, vector<16x32xf32> -> vector<16x32xf32>
    %c80 = arith.constant 80 : index
    %c0_33 = arith.constant 0 : index
    %29 = vector.load %arg7[%c80, %c0_33] : memref<256x32xf32, #tpu.memory_space<vmem>>, vector<16x32xf32>
    tpu.vector_store %arg7[%c80, %c0_33], %28 {strides = array<i32>} : memref<256x32xf32, #tpu.memory_space<vmem>>, vector<16x32xf32>,
    %c0_34 = arith.constant 0 : index
    %c384 = arith.constant 384 : index
    %c0_35 = arith.constant 0 : index
    %30 = vector.load %arg5[%c0_34, %c384, %c0_35] : memref<1x1024x32xf32, #tpu.memory_space<vmem>>, vector<1x64x32xf32>
    %31 = vector.shape_cast %30 : vector<1x64x32xf32> to vector<64x32xf32>
    %cst_36 = arith.constant dense<0.000000e+00> : vector<16x32xf32>
    %32 = tpu.matmul %3, %31, %cst_36 {dimension_numbers = #tpu.dot_dimension_numbers<[1], [0], [0], [1], [0, 0, 1, 1], [], []>} : vector<16x64xf32>, vector<64x32xf32>, vector<16x32xf32> -> vector<16x32xf32>
    %c96 = arith.constant 96 : index
    %c0_37 = arith.constant 0 : index
    %33 = vector.load %arg7[%c96, %c0_37] : memref<256x32xf32, #tpu.memory_space<vmem>>, vector<16x32xf32>
    tpu.vector_store %arg7[%c96, %c0_37], %32 {strides = array<i32>} : memref<256x32xf32, #tpu.memory_space<vmem>>, vector<16x32xf32>,
    %c0_38 = arith.constant 0 : index
    %c448 = arith.constant 448 : index
    %c0_39 = arith.constant 0 : index
    %34 = vector.load %arg5[%c0_38, %c448, %c0_39] : memref<1x1024x32xf32, #tpu.memory_space<vmem>>, vector<1x64x32xf32>
    %35 = vector.shape_cast %34 : vector<1x64x32xf32> to vector<64x32xf32>
    %cst_40 = arith.constant dense<0.000000e+00> : vector<16x32xf32>
    %36 = tpu.matmul %3, %35, %cst_40 {dimension_numbers = #tpu.dot_dimension_numbers<[1], [0], [0], [1], [0, 0, 1, 1], [], []>} : vector<16x64xf32>, vector<64x32xf32>, vector<16x32xf32> -> vector<16x32xf32>
    %c112 = arith.constant 112 : index
    %c0_41 = arith.constant 0 : index
    %37 = vector.load %arg7[%c112, %c0_41] : memref<256x32xf32, #tpu.memory_space<vmem>>, vector<16x32xf32>
    tpu.vector_store %arg7[%c112, %c0_41], %36 {strides = array<i32>} : memref<256x32xf32, #tpu.memory_space<vmem>>, vector<16x32xf32>,
    %c0_42 = arith.constant 0 : index
    %c512 = arith.constant 512 : index
    %c0_43 = arith.constant 0 : index
    %38 = vector.load %arg5[%c0_42, %c512, %c0_43] : memref<1x1024x32xf32, #tpu.memory_space<vmem>>, vector<1x64x32xf32>
    %39 = vector.shape_cast %38 : vector<1x64x32xf32> to vector<64x32xf32>
    %cst_44 = arith.constant dense<0.000000e+00> : vector<16x32xf32>
    %40 = tpu.matmul %3, %39, %cst_44 {dimension_numbers = #tpu.dot_dimension_numbers<[1], [0], [0], [1], [0, 0, 1, 1], [], []>} : vector<16x64xf32>, vector<64x32xf32>, vector<16x32xf32> -> vector<16x32xf32>
    %c128_45 = arith.constant 128 : index
    %c0_46 = arith.constant 0 : index
    %41 = vector.load %arg7[%c128_45, %c0_46] : memref<256x32xf32, #tpu.memory_space<vmem>>, vector<16x32xf32>
    tpu.vector_store %arg7[%c128_45, %c0_46], %40 {strides = array<i32>} : memref<256x32xf32, #tpu.memory_space<vmem>>, vector<16x32xf32>,
    %c0_47 = arith.constant 0 : index
    %c576 = arith.constant 576 : index
    %c0_48 = arith.constant 0 : index
    %42 = vector.load %arg5[%c0_47, %c576, %c0_48] : memref<1x1024x32xf32, #tpu.memory_space<vmem>>, vector<1x64x32xf32>
    %43 = vector.shape_cast %42 : vector<1x64x32xf32> to vector<64x32xf32>
    %cst_49 = arith.constant dense<0.000000e+00> : vector<16x32xf32>
    %44 = tpu.matmul %3, %43, %cst_49 {dimension_numbers = #tpu.dot_dimension_numbers<[1], [0], [0], [1], [0, 0, 1, 1], [], []>} : vector<16x64xf32>, vector<64x32xf32>, vector<16x32xf32> -> vector<16x32xf32>
    %c144 = arith.constant 144 : index
    %c0_50 = arith.constant 0 : index
    %45 = vector.load %arg7[%c144, %c0_50] : memref<256x32xf32, #tpu.memory_space<vmem>>, vector<16x32xf32>
    tpu.vector_store %arg7[%c144, %c0_50], %44 {strides = array<i32>} : memref<256x32xf32, #tpu.memory_space<vmem>>, vector<16x32xf32>,
    %c0_51 = arith.constant 0 : index
    %c640 = arith.constant 640 : index
    %c0_52 = arith.constant 0 : index
    %46 = vector.load %arg5[%c0_51, %c640, %c0_52] : memref<1x1024x32xf32, #tpu.memory_space<vmem>>, vector<1x64x32xf32>
    %47 = vector.shape_cast %46 : vector<1x64x32xf32> to vector<64x32xf32>
    %cst_53 = arith.constant dense<0.000000e+00> : vector<16x32xf32>
    %48 = tpu.matmul %3, %47, %cst_53 {dimension_numbers = #tpu.dot_dimension_numbers<[1], [0], [0], [1], [0, 0, 1, 1], [], []>} : vector<16x64xf32>, vector<64x32xf32>, vector<16x32xf32> -> vector<16x32xf32>
    %c160 = arith.constant 160 : index
    %c0_54 = arith.constant 0 : index
    %49 = vector.load %arg7[%c160, %c0_54] : memref<256x32xf32, #tpu.memory_space<vmem>>, vector<16x32xf32>
    tpu.vector_store %arg7[%c160, %c0_54], %48 {strides = array<i32>} : memref<256x32xf32, #tpu.memory_space<vmem>>, vector<16x32xf32>,
    %c0_55 = arith.constant 0 : index
    %c704 = arith.constant 704 : index
    %c0_56 = arith.constant 0 : index
    %50 = vector.load %arg5[%c0_55, %c704, %c0_56] : memref<1x1024x32xf32, #tpu.memory_space<vmem>>, vector<1x64x32xf32>
    %51 = vector.shape_cast %50 : vector<1x64x32xf32> to vector<64x32xf32>
    %cst_57 = arith.constant dense<0.000000e+00> : vector<16x32xf32>
    %52 = tpu.matmul %3, %51, %cst_57 {dimension_numbers = #tpu.dot_dimension_numbers<[1], [0], [0], [1], [0, 0, 1, 1], [], []>} : vector<16x64xf32>, vector<64x32xf32>, vector<16x32xf32> -> vector<16x32xf32>
    %c176 = arith.constant 176 : index
    %c0_58 = arith.constant 0 : index
    %53 = vector.load %arg7[%c176, %c0_58] : memref<256x32xf32, #tpu.memory_space<vmem>>, vector<16x32xf32>
    tpu.vector_store %arg7[%c176, %c0_58], %52 {strides = array<i32>} : memref<256x32xf32, #tpu.memory_space<vmem>>, vector<16x32xf32>,
    %c0_59 = arith.constant 0 : index
    %c768 = arith.constant 768 : index
    %c0_60 = arith.constant 0 : index
    %54 = vector.load %arg5[%c0_59, %c768, %c0_60] : memref<1x1024x32xf32, #tpu.memory_space<vmem>>, vector<1x64x32xf32>
    %55 = vector.shape_cast %54 : vector<1x64x32xf32> to vector<64x32xf32>
    %cst_61 = arith.constant dense<0.000000e+00> : vector<16x32xf32>
    %56 = tpu.matmul %3, %55, %cst_61 {dimension_numbers = #tpu.dot_dimension_numbers<[1], [0], [0], [1], [0, 0, 1, 1], [], []>} : vector<16x64xf32>, vector<64x32xf32>, vector<16x32xf32> -> vector<16x32xf32>
    %c192_62 = arith.constant 192 : index
    %c0_63 = arith.constant 0 : index
    %57 = vector.load %arg7[%c192_62, %c0_63] : memref<256x32xf32, #tpu.memory_space<vmem>>, vector<16x32xf32>
    tpu.vector_store %arg7[%c192_62, %c0_63], %56 {strides = array<i32>} : memref<256x32xf32, #tpu.memory_space<vmem>>, vector<16x32xf32>,
    %c0_64 = arith.constant 0 : index
    %c832 = arith.constant 832 : index
    %c0_65 = arith.constant 0 : index
    %58 = vector.load %arg5[%c0_64, %c832, %c0_65] : memref<1x1024x32xf32, #tpu.memory_space<vmem>>, vector<1x64x32xf32>
    %59 = vector.shape_cast %58 : vector<1x64x32xf32> to vector<64x32xf32>
    %cst_66 = arith.constant dense<0.000000e+00> : vector<16x32xf32>
    %60 = tpu.matmul %3, %59, %cst_66 {dimension_numbers = #tpu.dot_dimension_numbers<[1], [0], [0], [1], [0, 0, 1, 1], [], []>} : vector<16x64xf32>, vector<64x32xf32>, vector<16x32xf32> -> vector<16x32xf32>
    %c208 = arith.constant 208 : index
    %c0_67 = arith.constant 0 : index
    %61 = vector.load %arg7[%c208, %c0_67] : memref<256x32xf32, #tpu.memory_space<vmem>>, vector<16x32xf32>
    tpu.vector_store %arg7[%c208, %c0_67], %60 {strides = array<i32>} : memref<256x32xf32, #tpu.memory_space<vmem>>, vector<16x32xf32>,
    %c0_68 = arith.constant 0 : index
    %c896 = arith.constant 896 : index
    %c0_69 = arith.constant 0 : index
    %62 = vector.load %arg5[%c0_68, %c896, %c0_69] : memref<1x1024x32xf32, #tpu.memory_space<vmem>>, vector<1x64x32xf32>
    %63 = vector.shape_cast %62 : vector<1x64x32xf32> to vector<64x32xf32>
    %cst_70 = arith.constant dense<0.000000e+00> : vector<16x32xf32>
    %64 = tpu.matmul %3, %63, %cst_70 {dimension_numbers = #tpu.dot_dimension_numbers<[1], [0], [0], [1], [0, 0, 1, 1], [], []>} : vector<16x64xf32>, vector<64x32xf32>, vector<16x32xf32> -> vector<16x32xf32>
    %c224 = arith.constant 224 : index
    %c0_71 = arith.constant 0 : index
    %65 = vector.load %arg7[%c224, %c0_71] : memref<256x32xf32, #tpu.memory_space<vmem>>, vector<16x32xf32>
    tpu.vector_store %arg7[%c224, %c0_71], %64 {strides = array<i32>} : memref<256x32xf32, #tpu.memory_space<vmem>>, vector<16x32xf32>,
    %c0_72 = arith.constant 0 : index
    %c960 = arith.constant 960 : index
    %c0_73 = arith.constant 0 : index
    %66 = vector.load %arg5[%c0_72, %c960, %c0_73] : memref<1x1024x32xf32, #tpu.memory_space<vmem>>, vector<1x64x32xf32>
    %67 = vector.shape_cast %66 : vector<1x64x32xf32> to vector<64x32xf32>
    %cst_74 = arith.constant dense<0.000000e+00> : vector<16x32xf32>
    %68 = tpu.matmul %3, %67, %cst_74 {dimension_numbers = #tpu.dot_dimension_numbers<[1], [0], [0], [1], [0, 0, 1, 1], [], []>} : vector<16x64xf32>, vector<64x32xf32>, vector<16x32xf32> -> vector<16x32xf32>
    %c240 = arith.constant 240 : index
    %c0_75 = arith.constant 0 : index
    %69 = vector.load %arg7[%c240, %c0_75] : memref<256x32xf32, #tpu.memory_space<vmem>>, vector<16x32xf32>
    tpu.vector_store %arg7[%c240, %c0_75], %68 {strides = array<i32>} : memref<256x32xf32, #tpu.memory_space<vmem>>, vector<16x32xf32>,
    %c0_76 = arith.constant 0 : index
    %c0_77 = arith.constant 0 : index
    %70 = vector.load %arg7[%c0_76, %c0_77] : memref<256x32xf32, #tpu.memory_space<vmem>>, vector<256x32xf32>
    %cst_78 = arith.constant dense<0.000000e+00> : vector<256x128xf32>
    %71 = tpu.matmul %70, %5, %cst_78 {dimension_numbers = #tpu.dot_dimension_numbers<[1], [0], [0], [1], [0, 0, 1, 1], [], []>} : vector<256x32xf32>, vector<32x128xf32>, vector<256x128xf32> -> vector<256x128xf32>
    %72 = vector.broadcast %1 : vector<256x1xf32> to vector<256x128xf32>
    %73 = arith.addf %71, %72 : vector<256x128xf32>
    %c0_79 = arith.constant 0 : index
    %c0_80 = arith.constant 0 : index
    %c0_81 = arith.constant 0 : index
    %74 = vector.load %arg6[%c0_79, %c0_80, %c0_81] : memref<1x256x128xf32, #tpu.memory_space<vmem>>, vector<1x256x128xf32>
    %75 = vector.shape_cast %74 : vector<1x256x128xf32> to vector<256x128xf32>
    %76 = vector.shape_cast %73 : vector<256x128xf32> to vector<1x256x128xf32>
    tpu.vector_store %arg6[%c0_79, %c0_80, %c0_81], %76 {strides = array<i32>} : memref<1x256x128xf32, #tpu.memory_space<vmem>>, vector<1x256x128xf32>,
    return
  }
  func.func @transform_0(%arg0: i32, %arg1: i32) -> (i32, i32, i32) {
    %c0_i32 = arith.constant 0 : i32
    %c0_i32_0 = arith.constant 0 : i32
    %c0_i32_1 = arith.constant 0 : i32
    return %arg0, %c0_i32, %c0_i32_0 : i32, i32, i32
  }
  func.func @transform_1(%arg0: i32, %arg1: i32) -> (i32, i32, i32) {
    %c0_i32 = arith.constant 0 : i32
    %c0_i32_0 = arith.constant 0 : i32
    %c0_i32_1 = arith.constant 0 : i32
    return %arg1, %c0_i32, %c0_i32_0 : i32, i32, i32
  }
  func.func @transform_2(%arg0: i32, %arg1: i32) -> (i32, i32, i32) {
    %c0_i32 = arith.constant 0 : i32
    %c0_i32_0 = arith.constant 0 : i32
    %c0_i32_1 = arith.constant 0 : i32
    return %arg1, %c0_i32, %c0_i32_0 : i32, i32, i32
  }
  func.func @transform_3(%arg0: i32, %arg1: i32) -> (i32, i32, i32) {
    %c0_i32 = arith.constant 0 : i32
    %c0_i32_0 = arith.constant 0 : i32
    %c0_i32_1 = arith.constant 0 : i32
    return %arg0, %c0_i32, %c0_i32_0 : i32, i32, i32
  }
  func.func @transform_4(%arg0: i32, %arg1: i32) -> (i32, i32, i32) {
    %c0_i32 = arith.constant 0 : i32
    %c0_i32_0 = arith.constant 0 : i32
    return %arg1, %arg0, %c0_i32 : i32, i32, i32
  }
}

</mosaic_0001>

<llo_original>
// kernel: tpu_custom_call.1
$region0: #{tpu_custom_call.1}
  #allocation0 [shape = 'u32[]', space=smem, size = 0x4, offset = 0x4, fixed_abs, tag = 'smem constant byte address 0x4 - core index']
  #allocation1 [shape = 'u32[144,128]{1,0:T(1,128)}', space=vmem, size = 0x12000, scoped, tag = 'internal scratch']
  #allocation2 [shape = 'f32[256,32]{1,0:T(8,128)}', space=vmem, size = 0x20000, scoped, tag = 'scratch operand']
  %s0 = inlined_call_operand.vmem [shape: f32[1,256,1], index: 0, kind: input, shape index: {}]
  %s1 = inlined_call_operand.vmem [shape: f32[2,16,64], index: 1, kind: input, shape index: {}]
  %s2 = inlined_call_operand.vmem [shape: f32[2,32,128], index: 2, kind: input, shape index: {}]
  %s3 = inlined_call_operand.vmem [shape: f32[1,1024,32], index: 3, kind: input, shape index: {}]
  %s4 = inlined_call_operand.hbm [shape: f32[2,256,128], index: 4, kind: output, shape index: {}]
  %s5 = sld [smem:[#allocation0]]
  $region49: #{tpu_custom_call.1} parent=0
    _
  %s7 = ssub.s32 1, %s5
  %s8 = scalar_select 0, %s7, %s5
  $region1: #{tpu_custom_call.1} parent=0
    #allocation3 [shape = 'u8[262144]{0}', space=vmem, size = 0x40000, scoped, tag = 'output window, operand 0']
    #allocation4 [shape = 's32[2]{0}', space=sflag, size = 0x8, scoped, tag = 'scoped memory for tpu_custom_call.1']
    %9 = vsyncpa [#allocation4], 0
    %s10 = scalar_lea.sflag [#allocation4], 1
    %11 = vsyncpa %s10, 0
    loop: start=0, step=1, limit=4
    $region2: #{tpu_custom_call.1} parent=1 // loop_pre_header
      _
    $region3: #{tpu_custom_call.1} parent=1 // loop_header
      %s13 = sphi 0, %s17
      %p14 = scmp.ge.s32.totalorder %s13, 4
      %s20 = sphi 0, %s32
      %s21 = sphi 0, %s28
      %s22 = sphi 0, %s20
      %s23 = sphi 0, %s21
      %s24 = sphi 0, %s22
      %s25 = sphi 0, %s23
      %s35 = sphi 0, %s37
      %s38 = sphi 0, %s35
      %s39 = sphi 0, %s38
      %s55 = sphi 0, %s39
      %s61 = sphi 0, %s63
      %s64 = sphi 0, %s61
      %s65 = sphi 0, %s64
      %s81 = sphi 0, %s65
      %s87 = sphi 0, %s89
      %s90 = sphi 0, %s87
      %s91 = sphi 0, %s90
      %s107 = sphi 0, %s91
      %s113 = sphi 0, %s115
      %s116 = sphi 0, %s113
      %s117 = sphi 0, %s116
      %s133 = sphi 0, %s117
      %s141 = sphi 0, %s143
      %s144 = sphi 0, %s141
      %s145 = sphi 0, %s144
      %s161 = sphi 0, %s145
    $region4: #{tpu_custom_call.1} parent=1 // loop_header_branch
      %16 = sbr.rel (%p14) target = $region8
    $region5: #{tpu_custom_call.1} parent=1 // loop_body
      %s18 = ssub.s32 %s13, 1
      %s19 = ssub.s32 %s13, 2
      %s26 = sadd.s32 1, %s21
      %p27 = scmp.ge.s32.totalorder %s26, 2
      %s28 = scalar_select %p27, 0, %s26
      %s29 = sadd.s32 1, %s20
      %s30 = scalar_select %p27, %s29, %s20
      %p31 = scmp.ge.s32.totalorder %s30, 1
      %s32 = scalar_select %p31, 0, %s30
      %s33 = ssub.s32 %s20, %s32
      %p34 = scmp.eq.s32.totalorder %s33, 0
      %s36 = sadd.s32 %s35, 1
      %s37 = scalar_select %p34, %s35, %s36
      %p40 = pneg %p34
      %p41 = scmp.eq.s32.totalorder %s13, 1
      %p42 = por %p40, %p41
      %p43 = scmp.ne.s32.totalorder %s35, %s38
      %p44 = scmp.eq.s32.totalorder %s13, 0
      %p45 = por %p43, %p44
      %p46 = scmp.ne.s32.totalorder %s35, %s38
      %p47 = scmp.eq.s32.totalorder %s18, 1
      %p48 = por %p46, %p47
      %p49 = scmp.ne.s32.totalorder %s38, %s39
      %p50 = scmp.eq.s32.totalorder %s18, 0
      %p51 = por %p49, %p50
      %p52 = scmp.ne.s32.totalorder %s38, %s39
      %p53 = scmp.eq.s32.totalorder %s19, 1
      %p54 = por %p52, %p53
      %p56 = scmp.ne.s32.totalorder %s39, %s55
      %p57 = scmp.eq.s32.totalorder %s19, 0
      %p58 = por %p56, %p57
      %s59 = ssub.s32 %s21, %s28
      %p60 = scmp.eq.s32.totalorder %s59, 0
      %s62 = sadd.s32 %s61, 1
      %s63 = scalar_select %p60, %s61, %s62
      %p66 = pneg %p60
      %p67 = scmp.eq.s32.totalorder %s13, 1
      %p68 = por %p66, %p67
      %p69 = scmp.ne.s32.totalorder %s61, %s64
      %p70 = scmp.eq.s32.totalorder %s13, 0
      %p71 = por %p69, %p70
      %p72 = scmp.ne.s32.totalorder %s61, %s64
      %p73 = scmp.eq.s32.totalorder %s18, 1
      %p74 = por %p72, %p73
      %p75 = scmp.ne.s32.totalorder %s64, %s65
      %p76 = scmp.eq.s32.totalorder %s18, 0
      %p77 = por %p75, %p76
      %p78 = scmp.ne.s32.totalorder %s64, %s65
      %p79 = scmp.eq.s32.totalorder %s19, 1
      %p80 = por %p78, %p79
      %p82 = scmp.ne.s32.totalorder %s65, %s81
      %p83 = scmp.eq.s32.totalorder %s19, 0
      %p84 = por %p82, %p83
      %s85 = ssub.s32 %s21, %s28
      %p86 = scmp.eq.s32.totalorder %s85, 0
      %s88 = sadd.s32 %s87, 1
      %s89 = scalar_select %p86, %s87, %s88
      %p92 = pneg %p86
      %p93 = scmp.eq.s32.totalorder %s13, 1
      %p94 = por %p92, %p93
      %p95 = scmp.ne.s32.totalorder %s87, %s90
      %p96 = scmp.eq.s32.totalorder %s13, 0
      %p97 = por %p95, %p96
      %p98 = scmp.ne.s32.totalorder %s87, %s90
      %p99 = scmp.eq.s32.totalorder %s18, 1
      %p100 = por %p98, %p99
      %p101 = scmp.ne.s32.totalorder %s90, %s91
      %p102 = scmp.eq.s32.totalorder %s18, 0
      %p103 = por %p101, %p102
      %p104 = scmp.ne.s32.totalorder %s90, %s91
      %p105 = scmp.eq.s32.totalorder %s19, 1
      %p106 = por %p104, %p105
      %p108 = scmp.ne.s32.totalorder %s91, %s107
      %p109 = scmp.eq.s32.totalorder %s19, 0
      %p110 = por %p108, %p109
      %s111 = ssub.s32 %s20, %s32
      %p112 = scmp.eq.s32.totalorder %s111, 0
      %s114 = sadd.s32 %s113, 1
      %s115 = scalar_select %p112, %s113, %s114
      %p118 = pneg %p112
      %p119 = scmp.eq.s32.totalorder %s13, 1
      %p120 = por %p118, %p119
      %p121 = scmp.ne.s32.totalorder %s113, %s116
      %p122 = scmp.eq.s32.totalorder %s13, 0
      %p123 = por %p121, %p122
      %p124 = scmp.ne.s32.totalorder %s113, %s116
      %p125 = scmp.eq.s32.totalorder %s18, 1
      %p126 = por %p124, %p125
      %p127 = scmp.ne.s32.totalorder %s116, %s117
      %p128 = scmp.eq.s32.totalorder %s18, 0
      %p129 = por %p127, %p128
      %p130 = scmp.ne.s32.totalorder %s116, %s117
      %p131 = scmp.eq.s32.totalorder %s19, 1
      %p132 = por %p130, %p131
      %p134 = scmp.ne.s32.totalorder %s117, %s133
      %p135 = scmp.eq.s32.totalorder %s19, 0
      %p136 = por %p134, %p135
      %s137 = ssub.s32 %s21, %s28
      %s138 = ssub.s32 %s20, %s32
      %s139 = sor.u32 %s137, %s138
      %p140 = scmp.eq.s32.totalorder %s139, 0
      %s142 = sadd.s32 %s141, 1
      %s143 = scalar_select %p140, %s141, %s142
      %p146 = pneg %p140
      %p147 = scmp.eq.s32.totalorder %s13, 1
      %p148 = por %p146, %p147
      %p149 = scmp.ne.s32.totalorder %s141, %s144
      %p150 = scmp.eq.s32.totalorder %s13, 0
      %p151 = por %p149, %p150
      %p152 = scmp.ne.s32.totalorder %s141, %s144
      %p153 = scmp.eq.s32.totalorder %s18, 1
      %p154 = por %p152, %p153
      %p155 = scmp.ne.s32.totalorder %s144, %s145
      %p156 = scmp.eq.s32.totalorder %s18, 0
      %p157 = por %p155, %p156
      %p158 = scmp.ne.s32.totalorder %s144, %s145
      %p159 = scmp.eq.s32.totalorder %s19, 1
      %p160 = por %p158, %p159
      %p162 = scmp.ne.s32.totalorder %s145, %s161
      %p163 = scmp.eq.s32.totalorder %s19, 0
      %p164 = por %p162, %p163
      %p165 = scmp.le.s32.totalorder 1, %s13
      %p166 = scmp.lt.s32.totalorder %s13, 3
      %p167 = pnand %p165, %p166
      %p168 = pneg %p167
      // Predicated region
      $region9: #{tpu_custom_call.1} parent=5 // pred_check
        _
      $region10: #{tpu_custom_call.1} parent=5 // pred_check_branch
        %170 = sbr.rel (%p167) target = $region12
      $region11: #{tpu_custom_call.1} parent=5 // pred_region
        %s171 = ssub.s32 %s13, 1
        // Predicated region
        $region13: #{tpu_custom_call.1} parent=11 // pred_check
          %p172 = pneg %p51
        $region14: #{tpu_custom_call.1} parent=11 // pred_check_branch
          %174 = sbr.rel (%p172) target = $region16
        $region15: #{tpu_custom_call.1} parent=11 // pred_region
          %p175 = scmp.lt.s32.totalorder %s22, 0
          %s176 = scalar_select %p175, %s22, 0
          %s177 = smul.addr %s176, 32
          %s178 = smul.addr %s177, 8
          %s179 = scalar_lea.vmem %s0, %s178
        $region16: #{tpu_custom_call.1} parent=11 // pred_fallthru
          _
        // Predicated region
        $region17: #{tpu_custom_call.1} parent=11 // pred_check
          %p180 = pneg %p129
        $region18: #{tpu_custom_call.1} parent=11 // pred_check_branch
          %182 = sbr.rel (%p180) target = $region20
        $region19: #{tpu_custom_call.1} parent=11 // pred_region
          %p183 = scmp.lt.s32.totalorder %s22, 0
          %s184 = scalar_select %p183, %s22, 0
          %s185 = smul.addr %s184, 128
          %s186 = smul.addr %s185, 8
          %s187 = scalar_lea.vmem %s3, %s186
        $region20: #{tpu_custom_call.1} parent=11 // pred_fallthru
          _
      $region12: #{tpu_custom_call.1} parent=5 // pred_fallthru
        _
      %p188 = scmp.lt.s32.totalorder %s13, 2
      // Predicated region
      $region21: #{tpu_custom_call.1} parent=5 // pred_check
        %p189 = pneg %p188
      $region22: #{tpu_custom_call.1} parent=5 // pred_check_branch
        %191 = sbr.rel (%p189) target = $region24
      $region23: #{tpu_custom_call.1} parent=5 // pred_region
        // Predicated region
        $region25: #{tpu_custom_call.1} parent=23 // pred_check
          %p192 = pneg %p71
        $region26: #{tpu_custom_call.1} parent=23 // pred_check_branch
          %194 = sbr.rel (%p192) target = $region28
        $region27: #{tpu_custom_call.1} parent=23 // pred_region
          %p195 = scmp.lt.s32.totalorder %s21, 1
          %s196 = scalar_select %p195, %s21, 1
          %s197 = smul.addr %s196, 2
          %s198 = smul.addr %s197, 8
          %s199 = scalar_lea.vmem %s1, %s198
        $region28: #{tpu_custom_call.1} parent=23 // pred_fallthru
          _
        // Predicated region
        $region29: #{tpu_custom_call.1} parent=23 // pred_check
          %p200 = pneg %p97
        $region30: #{tpu_custom_call.1} parent=23 // pred_check_branch
          %202 = sbr.rel (%p200) target = $region32
        $region31: #{tpu_custom_call.1} parent=23 // pred_region
          %p203 = scmp.lt.s32.totalorder %s21, 1
          %s204 = scalar_select %p203, %s21, 1
          %s205 = smul.addr %s204, 4
          %s206 = smul.addr %s205, 8
          %s207 = scalar_lea.vmem %s2, %s206
        $region32: #{tpu_custom_call.1} parent=23 // pred_fallthru
          _
      $region24: #{tpu_custom_call.1} parent=5 // pred_fallthru
        _
      %p208 = scmp.le.s32.totalorder 1, %s13
      %p209 = scmp.lt.s32.totalorder %s13, 3
      %p210 = pnand %p208, %p209
      %p211 = pneg %p210
      // Predicated region
      $region33: #{tpu_custom_call.1} parent=5 // pred_check
        _
      $region34: #{tpu_custom_call.1} parent=5 // pred_check_branch
        %213 = sbr.rel (%p210) target = $region36
      $region35: #{tpu_custom_call.1} parent=5 // pred_region
        %s214 = ssub.s32 %s13, 1
        %p215 = scmp.lt.s32.totalorder %s22, 0
        %s216 = scalar_select %p215, %s22, 0
        %s217 = smul.addr %s216, 32
        %s218 = smul.addr %s217, 8
        %s219 = scalar_lea.vmem %s0, %s218
        %p220 = pneg %p51
        %p221 = pneg %p48
        %p222 = scmp.lt.s32.totalorder %s23, 1
        %s223 = scalar_select %p222, %s23, 1
        %s224 = smul.addr %s223, 2
        %s225 = smul.addr %s224, 8
        %s226 = scalar_lea.vmem %s1, %s225
        %p227 = pneg %p77
        %p228 = pneg %p74
        %p229 = scmp.lt.s32.totalorder %s23, 1
        %s230 = scalar_select %p229, %s23, 1
        %s231 = smul.addr %s230, 4
        %s232 = smul.addr %s231, 8
        %s233 = scalar_lea.vmem %s2, %s232
        %p234 = pneg %p103
        %p235 = pneg %p100
        %p236 = scmp.lt.s32.totalorder %s22, 0
        %s237 = scalar_select %p236, %s22, 0
        %s238 = smul.addr %s237, 128
        %s239 = smul.addr %s238, 8
        %s240 = scalar_lea.vmem %s3, %s239
        %p241 = pneg %p129
        %p242 = pneg %p126
        %p243 = pneg %p157
        %p244 = pneg %p154
        %s245 = sand.u32 %s144, 1
        %s246 = scalar_lea.sflag [#allocation4], %s245
        %s247 = sand.u32 %s144, 1
        %s248 = smul.addr %s247, 256
        %s249 = scalar_lea.vmem [#allocation3], %s248
        %p250 = scmp.lt.s32.totalorder %s22, 0
        %s251 = scalar_select %p250, %s22, 0
        %s252 = smul.addr %s251, 32
        %s253 = smul.addr %s252, 8
        %s254 = scalar_lea.vmem %s0, %s253
        %p255 = scmp.lt.s32.totalorder %s23, 1
        %s256 = scalar_select %p255, %s23, 1
        %s257 = smul.addr %s256, 2
        %s258 = smul.addr %s257, 8
        %s259 = scalar_lea.vmem %s1, %s258
        %p260 = scmp.lt.s32.totalorder %s23, 1
        %s261 = scalar_select %p260, %s23, 1
        %s262 = smul.addr %s261, 4
        %s263 = smul.addr %s262, 8
        %s264 = scalar_lea.vmem %s2, %s263
        %p265 = scmp.lt.s32.totalorder %s22, 0
        %s266 = scalar_select %p265, %s22, 0
        %s267 = smul.addr %s266, 128
        %s268 = smul.addr %s267, 8
        %s269 = scalar_lea.vmem %s3, %s268
        %s270 = smul.u32 32, %s22
        %v271 = vld [vmem:[%s254] sm:$0xff]
        %v272 = vld [vmem:[%s254 + $0x8] sm:$0xff]
        %v273 = vld [vmem:[%s254 + $0x10] sm:$0xff]
        %v274 = vld [vmem:[%s254 + $0x18] sm:$0xff]
        %v275 = vld [vmem:[%s254 + $0x20] sm:$0xff]
        %v276 = vld [vmem:[%s254 + $0x28] sm:$0xff]
        %v277 = vld [vmem:[%s254 + $0x30] sm:$0xff]
        %v278 = vld [vmem:[%s254 + $0x38] sm:$0xff]
        %v279 = vld [vmem:[%s254 + $0x40] sm:$0xff]
        %v280 = vld [vmem:[%s254 + $0x48] sm:$0xff]
        %v281 = vld [vmem:[%s254 + $0x50] sm:$0xff]
        %v282 = vld [vmem:[%s254 + $0x58] sm:$0xff]
        %v283 = vld [vmem:[%s254 + $0x60] sm:$0xff]
        %v284 = vld [vmem:[%s254 + $0x68] sm:$0xff]
        %v285 = vld [vmem:[%s254 + $0x70] sm:$0xff]
        %v286 = vld [vmem:[%s254 + $0x78] sm:$0xff]
        %v287 = vld [vmem:[%s254 + $0x80] sm:$0xff]
        %v288 = vld [vmem:[%s254 + $0x88] sm:$0xff]
        %v289 = vld [vmem:[%s254 + $0x90] sm:$0xff]
        %v290 = vld [vmem:[%s254 + $0x98] sm:$0xff]
        %v291 = vld [vmem:[%s254 + $0xa0] sm:$0xff]
        %v292 = vld [vmem:[%s254 + $0xa8] sm:$0xff]
        %v293 = vld [vmem:[%s254 + $0xb0] sm:$0xff]
        %v294 = vld [vmem:[%s254 + $0xb8] sm:$0xff]
        %v295 = vld [vmem:[%s254 + $0xc0] sm:$0xff]
        %v296 = vld [vmem:[%s254 + $0xc8] sm:$0xff]
        %v297 = vld [vmem:[%s254 + $0xd0] sm:$0xff]
        %v298 = vld [vmem:[%s254 + $0xd8] sm:$0xff]
        %v299 = vld [vmem:[%s254 + $0xe0] sm:$0xff]
        %v300 = vld [vmem:[%s254 + $0xe8] sm:$0xff]
        %v301 = vld [vmem:[%s254 + $0xf0] sm:$0xff]
        %v302 = vld [vmem:[%s254 + $0xf8] sm:$0xff]
        %v303 = vld [vmem:[%s259] sm:$0xff]
        %v304 = vld [vmem:[%s259 + $0x8] sm:$0xff]
        %v305 = vld [vmem:[%s264] sm:$0xff]
        %v306 = vld [vmem:[%s264 + $0x8] sm:$0xff]
        %v307 = vld [vmem:[%s264 + $0x10] sm:$0xff]
        %v308 = vld [vmem:[%s264 + $0x18] sm:$0xff]
        %v309 = vld [vmem:[%s269] sm:$0xff]
        %v310 = vld [vmem:[%s269 + $0x8] sm:$0xff]
        %v311 = vld [vmem:[%s269 + $0x10] sm:$0xff]
        %v312 = vld [vmem:[%s269 + $0x18] sm:$0xff]
        %v313 = vld [vmem:[%s269 + $0x20] sm:$0xff]
        %v314 = vld [vmem:[%s269 + $0x28] sm:$0xff]
        %v315 = vld [vmem:[%s269 + $0x30] sm:$0xff]
        %v316 = vld [vmem:[%s269 + $0x38] sm:$0xff]
        %vm317 = vcmask 523264
        %v319 = vsel %vm317, %v303, 0
        %v322 = vsel %vm317, %v304, 0
        %324 = vmatprep.subr.mxu0 0.0
        %325 = vmatpush1.msra.mxu0 %v309
        %326 = vmatprep.subr.mxu0 0.0
        %327 = vmatpush1.msra.mxu0 %v310
        %328 = vmatprep.subr.mxu0 0.0
        %329 = vmatpush1.msra.mxu0 %v311
        %330 = vmatprep.subr.mxu0 0.0
        %331 = vmatpush1.msra.mxu0 %v312
        %332 = vmatprep.subr.mxu0 0.0
        %333 = vmatpush1.msra.mxu0 %v313
        %334 = vmatprep.subr.mxu0 0.0
        %335 = vmatpush1.msra.mxu0 %v314
        %336 = vmatprep.subr.mxu0 0.0
        %337 = vmatpush1.msra.mxu0 %v315
        %338 = vmatprep.subr.mxu0 0.0
        %339 = vmatpush1.msra.mxu0 %v316
        %340 = vmatprep.subr.mxu0 0.0
        %341 = vmatpush1.msra.mxu0 0.0
        %342 = vmatprep.subr.mxu0 0.0
        %343 = vmatpush1.msra.mxu0 0.0
        %344 = vmatprep.subr.mxu0 0.0
        %345 = vmatpush1.msra.mxu0 0.0
        %346 = vmatprep.subr.mxu0 0.0
        %347 = vmatpush1.msra.mxu0 0.0
        %348 = vmatprep.subr.mxu0 0.0
        %349 = vmatpush1.msra.mxu0 0.0
        %350 = vmatprep.subr.mxu0 0.0
        %351 = vmatpush1.msra.mxu0 0.0
        %352 = vmatprep.subr.mxu0 0.0
        %353 = vmatpush1.msra.mxu0 0.0
        %354 = vmatprep.subr.mxu0 0.0
        %355 = vmatpush1.msra.mxu0 0.0
        %356 = vmatprep.subr.mxu0 0.0
        %357 = vmatpush1.msra.mxu0 0.0
        %358 = vmatprep.subr.mxu0 0.0
        %359 = vmatpush1.msra.mxu0 0.0
        %360 = vmatprep.subr.mxu0 0.0
        %361 = vmatpush1.msra.mxu0 0.0
        %362 = vmatprep.subr.mxu0 0.0
        %363 = vmatpush1.msra.mxu0 0.0
        %364 = vmatprep.subr.mxu0 0.0
        %365 = vmatpush1.msra.mxu0 0.0
        %366 = vmatprep.subr.mxu0 0.0
        %367 = vmatpush1.msra.mxu0 0.0
        %368 = vmatprep.subr.mxu0 0.0
        %369 = vmatpush1.msra.mxu0 0.0
        %370 = vmatprep.subr.mxu0 0.0
        %371 = vmatpush1.msra.mxu0 0.0
        %372 = vmatprep.subr.mxu0 0.0
        %373 = vmatpush1.msra.mxu0 0.0
        %374 = vmatprep.subr.mxu0 0.0
        %375 = vmatpush1.msra.mxu0 0.0
        %376 = vmatprep.subr.mxu0 0.0
        %377 = vmatpush1.msra.mxu0 0.0
        %378 = vmatprep.subr.mxu0 0.0
        %379 = vmatpush1.msra.mxu0 0.0
        %380 = vmatprep.subr.mxu0 0.0
        %381 = vmatpush1.msra.mxu0 0.0
        %382 = vmatprep.subr.mxu0 0.0
        %383 = vmatpush1.msra.mxu0 0.0
        %384 = vmatprep.subr.mxu0 0.0
        %385 = vmatpush1.msra.mxu0 0.0
        %386 = vmatprep.subr.mxu0 0.0
        %387 = vmatpush1.msra.mxu0 0.0
        %388 = vmatprep.mubr.f32.mxu0 0.0
        %389 = vmatmul.mubr.f32.gmra.mrb[0].mxu0 %v319
        %v390 = vpop.f32.mrb[0].mxu0
        %v391 = vadd.f32 0.0, %v390
        %v392 = vpop.f32.mrb[0].mxu0
        %393 = vmatprep.mubr.f32.mxu0 0.0
        %394 = vmatmul.mubr.f32.gmra.mrb[0].mxu0 %v322
        %v395 = vpop.f32.mrb[0].mxu0
        %v396 = vadd.f32 0.0, %v395
        %v397 = vpop.f32.mrb[0].mxu0
        %398 = vdwg.mxu0
        %vm399 = vcmask 261120
        %400 = vst.msk [vmem:[#allocation2] sm:$0xff] %vm399, %v391
        %401 = vst.msk [vmem:[#allocation2 + $0x8] sm:$0xff] %vm399, %v396
        %v402 = vld [vmem:[%s269 + $0x40] sm:$0xff]
        %v403 = vld [vmem:[%s269 + $0x48] sm:$0xff]
        %v404 = vld [vmem:[%s269 + $0x50] sm:$0xff]
        %v405 = vld [vmem:[%s269 + $0x58] sm:$0xff]
        %v406 = vld [vmem:[%s269 + $0x60] sm:$0xff]
        %v407 = vld [vmem:[%s269 + $0x68] sm:$0xff]
        %v408 = vld [vmem:[%s269 + $0x70] sm:$0xff]
        %v409 = vld [vmem:[%s269 + $0x78] sm:$0xff]
        %410 = vmatprep.subr.mxu0 0.0
        %411 = vmatpush1.msra.mxu0 %v402
        %412 = vmatprep.subr.mxu0 0.0
        %413 = vmatpush1.msra.mxu0 %v403
        %414 = vmatprep.subr.mxu0 0.0
        %415 = vmatpush1.msra.mxu0 %v404
        %416 = vmatprep.subr.mxu0 0.0
        %417 = vmatpush1.msra.mxu0 %v405
        %418 = vmatprep.subr.mxu0 0.0
        %419 = vmatpush1.msra.mxu0 %v406
        %420 = vmatprep.subr.mxu0 0.0
        %421 = vmatpush1.msra.mxu0 %v407
        %422 = vmatprep.subr.mxu0 0.0
        %423 = vmatpush1.msra.mxu0 %v408
        %424 = vmatprep.subr.mxu0 0.0
        %425 = vmatpush1.msra.mxu0 %v409
        %426 = vmatprep.subr.mxu0 0.0
        %427 = vmatpush1.msra.mxu0 0.0
        %428 = vmatprep.subr.mxu0 0.0
        %429 = vmatpush1.msra.mxu0 0.0
        %430 = vmatprep.subr.mxu0 0.0
        %431 = vmatpush1.msra.mxu0 0.0
        %432 = vmatprep.subr.mxu0 0.0
        %433 = vmatpush1.msra.mxu0 0.0
        %434 = vmatprep.subr.mxu0 0.0
        %435 = vmatpush1.msra.mxu0 0.0
        %436 = vmatprep.subr.mxu0 0.0
        %437 = vmatpush1.msra.mxu0 0.0
        %438 = vmatprep.subr.mxu0 0.0
        %439 = vmatpush1.msra.mxu0 0.0
        %440 = vmatprep.subr.mxu0 0.0
        %441 = vmatpush1.msra.mxu0 0.0
        %442 = vmatprep.subr.mxu0 0.0
        %443 = vmatpush1.msra.mxu0 0.0
        %444 = vmatprep.subr.mxu0 0.0
        %445 = vmatpush1.msra.mxu0 0.0
        %446 = vmatprep.subr.mxu0 0.0
        %447 = vmatpush1.msra.mxu0 0.0
        %448 = vmatprep.subr.mxu0 0.0
        %449 = vmatpush1.msra.mxu0 0.0
        %450 = vmatprep.subr.mxu0 0.0
        %451 = vmatpush1.msra.mxu0 0.0
        %452 = vmatprep.subr.mxu0 0.0
        %453 = vmatpush1.msra.mxu0 0.0
        %454 = vmatprep.subr.mxu0 0.0
        %455 = vmatpush1.msra.mxu0 0.0
        %456 = vmatprep.subr.mxu0 0.0
        %457 = vmatpush1.msra.mxu0 0.0
        %458 = vmatprep.subr.mxu0 0.0
        %459 = vmatpush1.msra.mxu0 0.0
        %460 = vmatprep.subr.mxu0 0.0
        %461 = vmatpush1.msra.mxu0 0.0
        %462 = vmatprep.subr.mxu0 0.0
        %463 = vmatpush1.msra.mxu0 0.0
        %464 = vmatprep.subr.mxu0 0.0
        %465 = vmatpush1.msra.mxu0 0.0
        %466 = vmatprep.subr.mxu0 0.0
        %467 = vmatpush1.msra.mxu0 0.0
        %468 = vmatprep.subr.mxu0 0.0
        %469 = vmatpush1.msra.mxu0 0.0
        %470 = vmatprep.subr.mxu0 0.0
        %471 = vmatpush1.msra.mxu0 0.0
        %472 = vmatprep.subr.mxu0 0.0
        %473 = vmatpush1.msra.mxu0 0.0
        %474 = vmatprep.mubr.f32.mxu0 0.0
        %475 = vmatmul.mubr.f32.gmra.mrb[0].mxu0 %v319
        %v476 = vpop.f32.mrb[0].mxu0
        %v477 = vadd.f32 0.0, %v476
        %v478 = vpop.f32.mrb[0].mxu0
        %479 = vmatprep.mubr.f32.mxu0 0.0
        %480 = vmatmul.mubr.f32.gmra.mrb[0].mxu0 %v322
        %v481 = vpop.f32.mrb[0].mxu0
        %v482 = vadd.f32 0.0, %v481
        %v483 = vpop.f32.mrb[0].mxu0
        %484 = vdwg.mxu0
        %485 = vst.msk [vmem:[#allocation2 + $0x10] sm:$0xff] %vm399, %v477
        %486 = vst.msk [vmem:[#allocation2 + $0x18] sm:$0xff] %vm399, %v482
        %v487 = vld [vmem:[%s269 + $0x80] sm:$0xff]
        %v488 = vld [vmem:[%s269 + $0x88] sm:$0xff]
        %v489 = vld [vmem:[%s269 + $0x90] sm:$0xff]
        %v490 = vld [vmem:[%s269 + $0x98] sm:$0xff]
        %v491 = vld [vmem:[%s269 + $0xa0] sm:$0xff]
        %v492 = vld [vmem:[%s269 + $0xa8] sm:$0xff]
        %v493 = vld [vmem:[%s269 + $0xb0] sm:$0xff]
        %v494 = vld [vmem:[%s269 + $0xb8] sm:$0xff]
        %495 = vmatprep.subr.mxu0 0.0
        %496 = vmatpush1.msra.mxu0 %v487
        %497 = vmatprep.subr.mxu0 0.0
        %498 = vmatpush1.msra.mxu0 %v488
        %499 = vmatprep.subr.mxu0 0.0
        %500 = vmatpush1.msra.mxu0 %v489
        %501 = vmatprep.subr.mxu0 0.0
        %502 = vmatpush1.msra.mxu0 %v490
        %503 = vmatprep.subr.mxu0 0.0
        %504 = vmatpush1.msra.mxu0 %v491
        %505 = vmatprep.subr.mxu0 0.0
        %506 = vmatpush1.msra.mxu0 %v492
        %507 = vmatprep.subr.mxu0 0.0
        %508 = vmatpush1.msra.mxu0 %v493
        %509 = vmatprep.subr.mxu0 0.0
        %510 = vmatpush1.msra.mxu0 %v494
        %511 = vmatprep.subr.mxu0 0.0
        %512 = vmatpush1.msra.mxu0 0.0
        %513 = vmatprep.subr.mxu0 0.0
        %514 = vmatpush1.msra.mxu0 0.0
        %515 = vmatprep.subr.mxu0 0.0
        %516 = vmatpush1.msra.mxu0 0.0
        %517 = vmatprep.subr.mxu0 0.0
        %518 = vmatpush1.msra.mxu0 0.0
        %519 = vmatprep.subr.mxu0 0.0
        %520 = vmatpush1.msra.mxu0 0.0
        %521 = vmatprep.subr.mxu0 0.0
        %522 = vmatpush1.msra.mxu0 0.0
        %523 = vmatprep.subr.mxu0 0.0
        %524 = vmatpush1.msra.mxu0 0.0
        %525 = vmatprep.subr.mxu0 0.0
        %526 = vmatpush1.msra.mxu0 0.0
        %527 = vmatprep.subr.mxu0 0.0
        %528 = vmatpush1.msra.mxu0 0.0
        %529 = vmatprep.subr.mxu0 0.0
        %530 = vmatpush1.msra.mxu0 0.0
        %531 = vmatprep.subr.mxu0 0.0
        %532 = vmatpush1.msra.mxu0 0.0
        %533 = vmatprep.subr.mxu0 0.0
        %534 = vmatpush1.msra.mxu0 0.0
        %535 = vmatprep.subr.mxu0 0.0
        %536 = vmatpush1.msra.mxu0 0.0
        %537 = vmatprep.subr.mxu0 0.0
        %538 = vmatpush1.msra.mxu0 0.0
        %539 = vmatprep.subr.mxu0 0.0
        %540 = vmatpush1.msra.mxu0 0.0
        %541 = vmatprep.subr.mxu0 0.0
        %542 = vmatpush1.msra.mxu0 0.0
        %543 = vmatprep.subr.mxu0 0.0
        %544 = vmatpush1.msra.mxu0 0.0
        %545 = vmatprep.subr.mxu0 0.0
        %546 = vmatpush1.msra.mxu0 0.0
        %547 = vmatprep.subr.mxu0 0.0
        %548 = vmatpush1.msra.mxu0 0.0
        %549 = vmatprep.subr.mxu0 0.0
        %550 = vmatpush1.msra.mxu0 0.0
        %551 = vmatprep.subr.mxu0 0.0
        %552 = vmatpush1.msra.mxu0 0.0
        %553 = vmatprep.subr.mxu0 0.0
        %554 = vmatpush1.msra.mxu0 0.0
        %555 = vmatprep.subr.mxu0 0.0
        %556 = vmatpush1.msra.mxu0 0.0
        %557 = vmatprep.subr.mxu0 0.0
        %558 = vmatpush1.msra.mxu0 0.0
        %559 = vmatprep.mubr.f32.mxu0 0.0
        %560 = vmatmul.mubr.f32.gmra.mrb[0].mxu0 %v319
        %v561 = vpop.f32.mrb[0].mxu0
        %v562 = vadd.f32 0.0, %v561
        %v563 = vpop.f32.mrb[0].mxu0
        %564 = vmatprep.mubr.f32.mxu0 0.0
        %565 = vmatmul.mubr.f32.gmra.mrb[0].mxu0 %v322
        %v566 = vpop.f32.mrb[0].mxu0
        %v567 = vadd.f32 0.0, %v566
        %v568 = vpop.f32.mrb[0].mxu0
        %569 = vdwg.mxu0
        %570 = vst.msk [vmem:[#allocation2 + $0x20] sm:$0xff] %vm399, %v562
        %571 = vst.msk [vmem:[#allocation2 + $0x28] sm:$0xff] %vm399, %v567
        %v572 = vld [vmem:[%s269 + $0xc0] sm:$0xff]
        %v573 = vld [vmem:[%s269 + $0xc8] sm:$0xff]
        %v574 = vld [vmem:[%s269 + $0xd0] sm:$0xff]
        %v575 = vld [vmem:[%s269 + $0xd8] sm:$0xff]
        %v576 = vld [vmem:[%s269 + $0xe0] sm:$0xff]
        %v577 = vld [vmem:[%s269 + $0xe8] sm:$0xff]
        %v578 = vld [vmem:[%s269 + $0xf0] sm:$0xff]
        %v579 = vld [vmem:[%s269 + $0xf8] sm:$0xff]
        %580 = vmatprep.subr.mxu0 0.0
        %581 = vmatpush1.msra.mxu0 %v572
        %582 = vmatprep.subr.mxu0 0.0
        %583 = vmatpush1.msra.mxu0 %v573
        %584 = vmatprep.subr.mxu0 0.0
        %585 = vmatpush1.msra.mxu0 %v574
        %586 = vmatprep.subr.mxu0 0.0
        %587 = vmatpush1.msra.mxu0 %v575
        %588 = vmatprep.subr.mxu0 0.0
        %589 = vmatpush1.msra.mxu0 %v576
        %590 = vmatprep.subr.mxu0 0.0
        %591 = vmatpush1.msra.mxu0 %v577
        %592 = vmatprep.subr.mxu0 0.0
        %593 = vmatpush1.msra.mxu0 %v578
        %594 = vmatprep.subr.mxu0 0.0
        %595 = vmatpush1.msra.mxu0 %v579
        %596 = vmatprep.subr.mxu0 0.0
        %597 = vmatpush1.msra.mxu0 0.0
        %598 = vmatprep.subr.mxu0 0.0
        %599 = vmatpush1.msra.mxu0 0.0
        %600 = vmatprep.subr.mxu0 0.0
        %601 = vmatpush1.msra.mxu0 0.0
        %602 = vmatprep.subr.mxu0 0.0
        %603 = vmatpush1.msra.mxu0 0.0
        %604 = vmatprep.subr.mxu0 0.0
        %605 = vmatpush1.msra.mxu0 0.0
        %606 = vmatprep.subr.mxu0 0.0
        %607 = vmatpush1.msra.mxu0 0.0
        %608 = vmatprep.subr.mxu0 0.0
        %609 = vmatpush1.msra.mxu0 0.0
        %610 = vmatprep.subr.mxu0 0.0
        %611 = vmatpush1.msra.mxu0 0.0
        %612 = vmatprep.subr.mxu0 0.0
        %613 = vmatpush1.msra.mxu0 0.0
        %614 = vmatprep.subr.mxu0 0.0
        %615 = vmatpush1.msra.mxu0 0.0
        %616 = vmatprep.subr.mxu0 0.0
        %617 = vmatpush1.msra.mxu0 0.0
        %618 = vmatprep.subr.mxu0 0.0
        %619 = vmatpush1.msra.mxu0 0.0
        %620 = vmatprep.subr.mxu0 0.0
        %621 = vmatpush1.msra.mxu0 0.0
        %622 = vmatprep.subr.mxu0 0.0
        %623 = vmatpush1.msra.mxu0 0.0
        %624 = vmatprep.subr.mxu0 0.0
        %625 = vmatpush1.msra.mxu0 0.0
        %626 = vmatprep.subr.mxu0 0.0
        %627 = vmatpush1.msra.mxu0 0.0
        %628 = vmatprep.subr.mxu0 0.0
        %629 = vmatpush1.msra.mxu0 0.0
        %630 = vmatprep.subr.mxu0 0.0
        %631 = vmatpush1.msra.mxu0 0.0
        %632 = vmatprep.subr.mxu0 0.0
        %633 = vmatpush1.msra.mxu0 0.0
        %634 = vmatprep.subr.mxu0 0.0
        %635 = vmatpush1.msra.mxu0 0.0
        %636 = vmatprep.subr.mxu0 0.0
        %637 = vmatpush1.msra.mxu0 0.0
        %638 = vmatprep.subr.mxu0 0.0
        %639 = vmatpush1.msra.mxu0 0.0
        %640 = vmatprep.subr.mxu0 0.0
        %641 = vmatpush1.msra.mxu0 0.0
        %642 = vmatprep.subr.mxu0 0.0
        %643 = vmatpush1.msra.mxu0 0.0
        %644 = vmatprep.mubr.f32.mxu0 0.0
        %645 = vmatmul.mubr.f32.gmra.mrb[0].mxu0 %v319
        %v646 = vpop.f32.mrb[0].mxu0
        %v647 = vadd.f32 0.0, %v646
        %v648 = vpop.f32.mrb[0].mxu0
        %649 = vmatprep.mubr.f32.mxu0 0.0
        %650 = vmatmul.mubr.f32.gmra.mrb[0].mxu0 %v322
        %v651 = vpop.f32.mrb[0].mxu0
        %v652 = vadd.f32 0.0, %v651
        %v653 = vpop.f32.mrb[0].mxu0
        %654 = vdwg.mxu0
        %655 = vst.msk [vmem:[#allocation2 + $0x30] sm:$0xff] %vm399, %v647
        %656 = vst.msk [vmem:[#allocation2 + $0x38] sm:$0xff] %vm399, %v652
        %v657 = vld [vmem:[%s269 + $0x100] sm:$0xff]
        %v658 = vld [vmem:[%s269 + $0x108] sm:$0xff]
        %v659 = vld [vmem:[%s269 + $0x110] sm:$0xff]
        %v660 = vld [vmem:[%s269 + $0x118] sm:$0xff]
        %v661 = vld [vmem:[%s269 + $0x120] sm:$0xff]
        %v662 = vld [vmem:[%s269 + $0x128] sm:$0xff]
        %v663 = vld [vmem:[%s269 + $0x130] sm:$0xff]
        %v664 = vld [vmem:[%s269 + $0x138] sm:$0xff]
        %665 = vmatprep.subr.mxu0 0.0
        %666 = vmatpush1.msra.mxu0 %v657
        %667 = vmatprep.subr.mxu0 0.0
        %668 = vmatpush1.msra.mxu0 %v658
        %669 = vmatprep.subr.mxu0 0.0
        %670 = vmatpush1.msra.mxu0 %v659
        %671 = vmatprep.subr.mxu0 0.0
        %672 = vmatpush1.msra.mxu0 %v660
        %673 = vmatprep.subr.mxu0 0.0
        %674 = vmatpush1.msra.mxu0 %v661
        %675 = vmatprep.subr.mxu0 0.0
        %676 = vmatpush1.msra.mxu0 %v662
        %677 = vmatprep.subr.mxu0 0.0
        %678 = vmatpush1.msra.mxu0 %v663
        %679 = vmatprep.subr.mxu0 0.0
        %680 = vmatpush1.msra.mxu0 %v664
        %681 = vmatprep.subr.mxu0 0.0
        %682 = vmatpush1.msra.mxu0 0.0
        %683 = vmatprep.subr.mxu0 0.0
        %684 = vmatpush1.msra.mxu0 0.0
        %685 = vmatprep.subr.mxu0 0.0
        %686 = vmatpush1.msra.mxu0 0.0
        %687 = vmatprep.subr.mxu0 0.0
        %688 = vmatpush1.msra.mxu0 0.0
        %689 = vmatprep.subr.mxu0 0.0
        %690 = vmatpush1.msra.mxu0 0.0
        %691 = vmatprep.subr.mxu0 0.0
        %692 = vmatpush1.msra.mxu0 0.0
        %693 = vmatprep.subr.mxu0 0.0
        %694 = vmatpush1.msra.mxu0 0.0
        %695 = vmatprep.subr.mxu0 0.0
        %696 = vmatpush1.msra.mxu0 0.0
        %697 = vmatprep.subr.mxu0 0.0
        %698 = vmatpush1.msra.mxu0 0.0
        %699 = vmatprep.subr.mxu0 0.0
        %700 = vmatpush1.msra.mxu0 0.0
        %701 = vmatprep.subr.mxu0 0.0
        %702 = vmatpush1.msra.mxu0 0.0
        %703 = vmatprep.subr.mxu0 0.0
        %704 = vmatpush1.msra.mxu0 0.0
        %705 = vmatprep.subr.mxu0 0.0
        %706 = vmatpush1.msra.mxu0 0.0
        %707 = vmatprep.subr.mxu0 0.0
        %708 = vmatpush1.msra.mxu0 0.0
        %709 = vmatprep.subr.mxu0 0.0
        %710 = vmatpush1.msra.mxu0 0.0
        %711 = vmatprep.subr.mxu0 0.0
        %712 = vmatpush1.msra.mxu0 0.0
        %713 = vmatprep.subr.mxu0 0.0
        %714 = vmatpush1.msra.mxu0 0.0
        %715 = vmatprep.subr.mxu0 0.0
        %716 = vmatpush1.msra.mxu0 0.0
        %717 = vmatprep.subr.mxu0 0.0
        %718 = vmatpush1.msra.mxu0 0.0
        %719 = vmatprep.subr.mxu0 0.0
        %720 = vmatpush1.msra.mxu0 0.0
        %721 = vmatprep.subr.mxu0 0.0
        %722 = vmatpush1.msra.mxu0 0.0
        %723 = vmatprep.subr.mxu0 0.0
        %724 = vmatpush1.msra.mxu0 0.0
        %725 = vmatprep.subr.mxu0 0.0
        %726 = vmatpush1.msra.mxu0 0.0
        %727 = vmatprep.subr.mxu0 0.0
        %728 = vmatpush1.msra.mxu0 0.0
        %729 = vmatprep.mubr.f32.mxu0 0.0
        %730 = vmatmul.mubr.f32.gmra.mrb[0].mxu0 %v319
        %v731 = vpop.f32.mrb[0].mxu0
        %v732 = vadd.f32 0.0, %v731
        %v733 = vpop.f32.mrb[0].mxu0
        %734 = vmatprep.mubr.f32.mxu0 0.0
        %735 = vmatmul.mubr.f32.gmra.mrb[0].mxu0 %v322
        %v736 = vpop.f32.mrb[0].mxu0
        %v737 = vadd.f32 0.0, %v736
        %v738 = vpop.f32.mrb[0].mxu0
        %739 = vdwg.mxu0
        %740 = vst.msk [vmem:[#allocation2 + $0x40] sm:$0xff] %vm399, %v732
        %741 = vst.msk [vmem:[#allocation2 + $0x48] sm:$0xff] %vm399, %v737
        %v742 = vld [vmem:[%s269 + $0x140] sm:$0xff]
        %v743 = vld [vmem:[%s269 + $0x148] sm:$0xff]
        %v744 = vld [vmem:[%s269 + $0x150] sm:$0xff]
        %v745 = vld [vmem:[%s269 + $0x158] sm:$0xff]
        %v746 = vld [vmem:[%s269 + $0x160] sm:$0xff]
        %v747 = vld [vmem:[%s269 + $0x168] sm:$0xff]
        %v748 = vld [vmem:[%s269 + $0x170] sm:$0xff]
        %v749 = vld [vmem:[%s269 + $0x178] sm:$0xff]
        %750 = vmatprep.subr.mxu0 0.0
        %751 = vmatpush1.msra.mxu0 %v742
        %752 = vmatprep.subr.mxu0 0.0
        %753 = vmatpush1.msra.mxu0 %v743
        %754 = vmatprep.subr.mxu0 0.0
        %755 = vmatpush1.msra.mxu0 %v744
        %756 = vmatprep.subr.mxu0 0.0
        %757 = vmatpush1.msra.mxu0 %v745
        %758 = vmatprep.subr.mxu0 0.0
        %759 = vmatpush1.msra.mxu0 %v746
        %760 = vmatprep.subr.mxu0 0.0
        %761 = vmatpush1.msra.mxu0 %v747
        %762 = vmatprep.subr.mxu0 0.0
        %763 = vmatpush1.msra.mxu0 %v748
        %764 = vmatprep.subr.mxu0 0.0
        %765 = vmatpush1.msra.mxu0 %v749
        %766 = vmatprep.subr.mxu0 0.0
        %767 = vmatpush1.msra.mxu0 0.0
        %768 = vmatprep.subr.mxu0 0.0
        %769 = vmatpush1.msra.mxu0 0.0
        %770 = vmatprep.subr.mxu0 0.0
        %771 = vmatpush1.msra.mxu0 0.0
        %772 = vmatprep.subr.mxu0 0.0
        %773 = vmatpush1.msra.mxu0 0.0
        %774 = vmatprep.subr.mxu0 0.0
        %775 = vmatpush1.msra.mxu0 0.0
        %776 = vmatprep.subr.mxu0 0.0
        %777 = vmatpush1.msra.mxu0 0.0
        %778 = vmatprep.subr.mxu0 0.0
        %779 = vmatpush1.msra.mxu0 0.0
        %780 = vmatprep.subr.mxu0 0.0
        %781 = vmatpush1.msra.mxu0 0.0
        %782 = vmatprep.subr.mxu0 0.0
        %783 = vmatpush1.msra.mxu0 0.0
        %784 = vmatprep.subr.mxu0 0.0
        %785 = vmatpush1.msra.mxu0 0.0
        %786 = vmatprep.subr.mxu0 0.0
        %787 = vmatpush1.msra.mxu0 0.0
        %788 = vmatprep.subr.mxu0 0.0
        %789 = vmatpush1.msra.mxu0 0.0
        %790 = vmatprep.subr.mxu0 0.0
        %791 = vmatpush1.msra.mxu0 0.0
        %792 = vmatprep.subr.mxu0 0.0
        %793 = vmatpush1.msra.mxu0 0.0
        %794 = vmatprep.subr.mxu0 0.0
        %795 = vmatpush1.msra.mxu0 0.0
        %796 = vmatprep.subr.mxu0 0.0
        %797 = vmatpush1.msra.mxu0 0.0
        %798 = vmatprep.subr.mxu0 0.0
        %799 = vmatpush1.msra.mxu0 0.0
        %800 = vmatprep.subr.mxu0 0.0
        %801 = vmatpush1.msra.mxu0 0.0
        %802 = vmatprep.subr.mxu0 0.0
        %803 = vmatpush1.msra.mxu0 0.0
        %804 = vmatprep.subr.mxu0 0.0
        %805 = vmatpush1.msra.mxu0 0.0
        %806 = vmatprep.subr.mxu0 0.0
        %807 = vmatpush1.msra.mxu0 0.0
        %808 = vmatprep.subr.mxu0 0.0
        %809 = vmatpush1.msra.mxu0 0.0
        %810 = vmatprep.subr.mxu0 0.0
        %811 = vmatpush1.msra.mxu0 0.0
        %812 = vmatprep.subr.mxu0 0.0
        %813 = vmatpush1.msra.mxu0 0.0
        %814 = vmatprep.mubr.f32.mxu0 0.0
        %815 = vmatmul.mubr.f32.gmra.mrb[0].mxu0 %v319
        %v816 = vpop.f32.mrb[0].mxu0
        %v817 = vadd.f32 0.0, %v816
        %v818 = vpop.f32.mrb[0].mxu0
        %819 = vmatprep.mubr.f32.mxu0 0.0
        %820 = vmatmul.mubr.f32.gmra.mrb[0].mxu0 %v322
        %v821 = vpop.f32.mrb[0].mxu0
        %v822 = vadd.f32 0.0, %v821
        %v823 = vpop.f32.mrb[0].mxu0
        %824 = vdwg.mxu0
        %825 = vst.msk [vmem:[#allocation2 + $0x50] sm:$0xff] %vm399, %v817
        %826 = vst.msk [vmem:[#allocation2 + $0x58] sm:$0xff] %vm399, %v822
        %v827 = vld [vmem:[%s269 + $0x180] sm:$0xff]
        %v828 = vld [vmem:[%s269 + $0x188] sm:$0xff]
        %v829 = vld [vmem:[%s269 + $0x190] sm:$0xff]
        %v830 = vld [vmem:[%s269 + $0x198] sm:$0xff]
        %v831 = vld [vmem:[%s269 + $0x1a0] sm:$0xff]
        %v832 = vld [vmem:[%s269 + $0x1a8] sm:$0xff]
        %v833 = vld [vmem:[%s269 + $0x1b0] sm:$0xff]
        %v834 = vld [vmem:[%s269 + $0x1b8] sm:$0xff]
        %835 = vmatprep.subr.mxu0 0.0
        %836 = vmatpush1.msra.mxu0 %v827
        %837 = vmatprep.subr.mxu0 0.0
        %838 = vmatpush1.msra.mxu0 %v828
        %839 = vmatprep.subr.mxu0 0.0
        %840 = vmatpush1.msra.mxu0 %v829
        %841 = vmatprep.subr.mxu0 0.0
        %842 = vmatpush1.msra.mxu0 %v830
        %843 = vmatprep.subr.mxu0 0.0
        %844 = vmatpush1.msra.mxu0 %v831
        %845 = vmatprep.subr.mxu0 0.0
        %846 = vmatpush1.msra.mxu0 %v832
        %847 = vmatprep.subr.mxu0 0.0
        %848 = vmatpush1.msra.mxu0 %v833
        %849 = vmatprep.subr.mxu0 0.0
        %850 = vmatpush1.msra.mxu0 %v834
        %851 = vmatprep.subr.mxu0 0.0
        %852 = vmatpush1.msra.mxu0 0.0
        %853 = vmatprep.subr.mxu0 0.0
        %854 = vmatpush1.msra.mxu0 0.0
        %855 = vmatprep.subr.mxu0 0.0
        %856 = vmatpush1.msra.mxu0 0.0
        %857 = vmatprep.subr.mxu0 0.0
        %858 = vmatpush1.msra.mxu0 0.0
        %859 = vmatprep.subr.mxu0 0.0
        %860 = vmatpush1.msra.mxu0 0.0
        %861 = vmatprep.subr.mxu0 0.0
        %862 = vmatpush1.msra.mxu0 0.0
        %863 = vmatprep.subr.mxu0 0.0
        %864 = vmatpush1.msra.mxu0 0.0
        %865 = vmatprep.subr.mxu0 0.0
        %866 = vmatpush1.msra.mxu0 0.0
        %867 = vmatprep.subr.mxu0 0.0
        %868 = vmatpush1.msra.mxu0 0.0
        %869 = vmatprep.subr.mxu0 0.0
        %870 = vmatpush1.msra.mxu0 0.0
        %871 = vmatprep.subr.mxu0 0.0
        %872 = vmatpush1.msra.mxu0 0.0
        %873 = vmatprep.subr.mxu0 0.0
        %874 = vmatpush1.msra.mxu0 0.0
        %875 = vmatprep.subr.mxu0 0.0
        %876 = vmatpush1.msra.mxu0 0.0
        %877 = vmatprep.subr.mxu0 0.0
        %878 = vmatpush1.msra.mxu0 0.0
        %879 = vmatprep.subr.mxu0 0.0
        %880 = vmatpush1.msra.mxu0 0.0
        %881 = vmatprep.subr.mxu0 0.0
        %882 = vmatpush1.msra.mxu0 0.0
        %883 = vmatprep.subr.mxu0 0.0
        %884 = vmatpush1.msra.mxu0 0.0
        %885 = vmatprep.subr.mxu0 0.0
        %886 = vmatpush1.msra.mxu0 0.0
        %887 = vmatprep.subr.mxu0 0.0
        %888 = vmatpush1.msra.mxu0 0.0
        %889 = vmatprep.subr.mxu0 0.0
        %890 = vmatpush1.msra.mxu0 0.0
        %891 = vmatprep.subr.mxu0 0.0
        %892 = vmatpush1.msra.mxu0 0.0
        %893 = vmatprep.subr.mxu0 0.0
        %894 = vmatpush1.msra.mxu0 0.0
        %895 = vmatprep.subr.mxu0 0.0
        %896 = vmatpush1.msra.mxu0 0.0
        %897 = vmatprep.subr.mxu0 0.0
        %898 = vmatpush1.msra.mxu0 0.0
        %899 = vmatprep.mubr.f32.mxu0 0.0
        %900 = vmatmul.mubr.f32.gmra.mrb[0].mxu0 %v319
        %v901 = vpop.f32.mrb[0].mxu0
        %v902 = vadd.f32 0.0, %v901
        %v903 = vpop.f32.mrb[0].mxu0
        %904 = vmatprep.mubr.f32.mxu0 0.0
        %905 = vmatmul.mubr.f32.gmra.mrb[0].mxu0 %v322
        %v906 = vpop.f32.mrb[0].mxu0
        %v907 = vadd.f32 0.0, %v906
        %v908 = vpop.f32.mrb[0].mxu0
        %909 = vdwg.mxu0
        %910 = vst.msk [vmem:[#allocation2 + $0x60] sm:$0xff] %vm399, %v902
        %911 = vst.msk [vmem:[#allocation2 + $0x68] sm:$0xff] %vm399, %v907
        %v912 = vld [vmem:[%s269 + $0x1c0] sm:$0xff]
        %v913 = vld [vmem:[%s269 + $0x1c8] sm:$0xff]
        %v914 = vld [vmem:[%s269 + $0x1d0] sm:$0xff]
        %v915 = vld [vmem:[%s269 + $0x1d8] sm:$0xff]
        %v916 = vld [vmem:[%s269 + $0x1e0] sm:$0xff]
        %v917 = vld [vmem:[%s269 + $0x1e8] sm:$0xff]
        %v918 = vld [vmem:[%s269 + $0x1f0] sm:$0xff]
        %v919 = vld [vmem:[%s269 + $0x1f8] sm:$0xff]
        %920 = vmatprep.subr.mxu0 0.0
        %921 = vmatpush1.msra.mxu0 %v912
        %922 = vmatprep.subr.mxu0 0.0
        %923 = vmatpush1.msra.mxu0 %v913
        %924 = vmatprep.subr.mxu0 0.0
        %925 = vmatpush1.msra.mxu0 %v914
        %926 = vmatprep.subr.mxu0 0.0
        %927 = vmatpush1.msra.mxu0 %v915
        %928 = vmatprep.subr.mxu0 0.0
        %929 = vmatpush1.msra.mxu0 %v916
        %930 = vmatprep.subr.mxu0 0.0
        %931 = vmatpush1.msra.mxu0 %v917
        %932 = vmatprep.subr.mxu0 0.0
        %933 = vmatpush1.msra.mxu0 %v918
        %934 = vmatprep.subr.mxu0 0.0
        %935 = vmatpush1.msra.mxu0 %v919
        %936 = vmatprep.subr.mxu0 0.0
        %937 = vmatpush1.msra.mxu0 0.0
        %938 = vmatprep.subr.mxu0 0.0
        %939 = vmatpush1.msra.mxu0 0.0
        %940 = vmatprep.subr.mxu0 0.0
        %941 = vmatpush1.msra.mxu0 0.0
        %942 = vmatprep.subr.mxu0 0.0
        %943 = vmatpush1.msra.mxu0 0.0
        %944 = vmatprep.subr.mxu0 0.0
        %945 = vmatpush1.msra.mxu0 0.0
        %946 = vmatprep.subr.mxu0 0.0
        %947 = vmatpush1.msra.mxu0 0.0
        %948 = vmatprep.subr.mxu0 0.0
        %949 = vmatpush1.msra.mxu0 0.0
        %950 = vmatprep.subr.mxu0 0.0
        %951 = vmatpush1.msra.mxu0 0.0
        %952 = vmatprep.subr.mxu0 0.0
        %953 = vmatpush1.msra.mxu0 0.0
        %954 = vmatprep.subr.mxu0 0.0
        %955 = vmatpush1.msra.mxu0 0.0
        %956 = vmatprep.subr.mxu0 0.0
        %957 = vmatpush1.msra.mxu0 0.0
        %958 = vmatprep.subr.mxu0 0.0
        %959 = vmatpush1.msra.mxu0 0.0
        %960 = vmatprep.subr.mxu0 0.0
        %961 = vmatpush1.msra.mxu0 0.0
        %962 = vmatprep.subr.mxu0 0.0
        %963 = vmatpush1.msra.mxu0 0.0
        %964 = vmatprep.subr.mxu0 0.0
        %965 = vmatpush1.msra.mxu0 0.0
        %966 = vmatprep.subr.mxu0 0.0
        %967 = vmatpush1.msra.mxu0 0.0
        %968 = vmatprep.subr.mxu0 0.0
        %969 = vmatpush1.msra.mxu0 0.0
        %970 = vmatprep.subr.mxu0 0.0
        %971 = vmatpush1.msra.mxu0 0.0
        %972 = vmatprep.subr.mxu0 0.0
        %973 = vmatpush1.msra.mxu0 0.0
        %974 = vmatprep.subr.mxu0 0.0
        %975 = vmatpush1.msra.mxu0 0.0
        %976 = vmatprep.subr.mxu0 0.0
        %977 = vmatpush1.msra.mxu0 0.0
        %978 = vmatprep.subr.mxu0 0.0
        %979 = vmatpush1.msra.mxu0 0.0
        %980 = vmatprep.subr.mxu0 0.0
        %981 = vmatpush1.msra.mxu0 0.0
        %982 = vmatprep.subr.mxu0 0.0
        %983 = vmatpush1.msra.mxu0 0.0
        %984 = vmatprep.mubr.f32.mxu0 0.0
        %985 = vmatmul.mubr.f32.gmra.mrb[0].mxu0 %v319
        %v986 = vpop.f32.mrb[0].mxu0
        %v987 = vadd.f32 0.0, %v986
        %v988 = vpop.f32.mrb[0].mxu0
        %989 = vmatprep.mubr.f32.mxu0 0.0
        %990 = vmatmul.mubr.f32.gmra.mrb[0].mxu0 %v322
        %v991 = vpop.f32.mrb[0].mxu0
        %v992 = vadd.f32 0.0, %v991
        %v993 = vpop.f32.mrb[0].mxu0
        %994 = vdwg.mxu0
        %995 = vst.msk [vmem:[#allocation2 + $0x70] sm:$0xff] %vm399, %v987
        %996 = vst.msk [vmem:[#allocation2 + $0x78] sm:$0xff] %vm399, %v992
        %v997 = vld [vmem:[%s269 + $0x200] sm:$0xff]
        %v998 = vld [vmem:[%s269 + $0x208] sm:$0xff]
        %v999 = vld [vmem:[%s269 + $0x210] sm:$0xff]
        %v1000 = vld [vmem:[%s269 + $0x218] sm:$0xff]
        %v1001 = vld [vmem:[%s269 + $0x220] sm:$0xff]
        %v1002 = vld [vmem:[%s269 + $0x228] sm:$0xff]
        %v1003 = vld [vmem:[%s269 + $0x230] sm:$0xff]
        %v1004 = vld [vmem:[%s269 + $0x238] sm:$0xff]
        %1005 = vmatprep.subr.mxu0 0.0
        %1006 = vmatpush1.msra.mxu0 %v997
        %1007 = vmatprep.subr.mxu0 0.0
        %1008 = vmatpush1.msra.mxu0 %v998
        %1009 = vmatprep.subr.mxu0 0.0
        %1010 = vmatpush1.msra.mxu0 %v999
        %1011 = vmatprep.subr.mxu0 0.0
        %1012 = vmatpush1.msra.mxu0 %v1000
        %1013 = vmatprep.subr.mxu0 0.0
        %1014 = vmatpush1.msra.mxu0 %v1001
        %1015 = vmatprep.subr.mxu0 0.0
        %1016 = vmatpush1.msra.mxu0 %v1002
        %1017 = vmatprep.subr.mxu0 0.0
        %1018 = vmatpush1.msra.mxu0 %v1003
        %1019 = vmatprep.subr.mxu0 0.0
        %1020 = vmatpush1.msra.mxu0 %v1004
        %1021 = vmatprep.subr.mxu0 0.0
        %1022 = vmatpush1.msra.mxu0 0.0
        %1023 = vmatprep.subr.mxu0 0.0
        %1024 = vmatpush1.msra.mxu0 0.0
        %1025 = vmatprep.subr.mxu0 0.0
        %1026 = vmatpush1.msra.mxu0 0.0
        %1027 = vmatprep.subr.mxu0 0.0
        %1028 = vmatpush1.msra.mxu0 0.0
        %1029 = vmatprep.subr.mxu0 0.0
        %1030 = vmatpush1.msra.mxu0 0.0
        %1031 = vmatprep.subr.mxu0 0.0
        %1032 = vmatpush1.msra.mxu0 0.0
        %1033 = vmatprep.subr.mxu0 0.0
        %1034 = vmatpush1.msra.mxu0 0.0
        %1035 = vmatprep.subr.mxu0 0.0
        %1036 = vmatpush1.msra.mxu0 0.0
        %1037 = vmatprep.subr.mxu0 0.0
        %1038 = vmatpush1.msra.mxu0 0.0
        %1039 = vmatprep.subr.mxu0 0.0
        %1040 = vmatpush1.msra.mxu0 0.0
        %1041 = vmatprep.subr.mxu0 0.0
        %1042 = vmatpush1.msra.mxu0 0.0
        %1043 = vmatprep.subr.mxu0 0.0
        %1044 = vmatpush1.msra.mxu0 0.0
        %1045 = vmatprep.subr.mxu0 0.0
        %1046 = vmatpush1.msra.mxu0 0.0
        %1047 = vmatprep.subr.mxu0 0.0
        %1048 = vmatpush1.msra.mxu0 0.0
        %1049 = vmatprep.subr.mxu0 0.0
        %1050 = vmatpush1.msra.mxu0 0.0
        %1051 = vmatprep.subr.mxu0 0.0
        %1052 = vmatpush1.msra.mxu0 0.0
        %1053 = vmatprep.subr.mxu0 0.0
        %1054 = vmatpush1.msra.mxu0 0.0
        %1055 = vmatprep.subr.mxu0 0.0
        %1056 = vmatpush1.msra.mxu0 0.0
        %1057 = vmatprep.subr.mxu0 0.0
        %1058 = vmatpush1.msra.mxu0 0.0
        %1059 = vmatprep.subr.mxu0 0.0
        %1060 = vmatpush1.msra.mxu0 0.0
        %1061 = vmatprep.subr.mxu0 0.0
        %1062 = vmatpush1.msra.mxu0 0.0
        %1063 = vmatprep.subr.mxu0 0.0
        %1064 = vmatpush1.msra.mxu0 0.0
        %1065 = vmatprep.subr.mxu0 0.0
        %1066 = vmatpush1.msra.mxu0 0.0
        %1067 = vmatprep.subr.mxu0 0.0
        %1068 = vmatpush1.msra.mxu0 0.0
        %1069 = vmatprep.mubr.f32.mxu0 0.0
        %1070 = vmatmul.mubr.f32.gmra.mrb[0].mxu0 %v319
        %v1071 = vpop.f32.mrb[0].mxu0
        %v1072 = vadd.f32 0.0, %v1071
        %v1073 = vpop.f32.mrb[0].mxu0
        %1074 = vmatprep.mubr.f32.mxu0 0.0
        %1075 = vmatmul.mubr.f32.gmra.mrb[0].mxu0 %v322
        %v1076 = vpop.f32.mrb[0].mxu0
        %v1077 = vadd.f32 0.0, %v1076
        %v1078 = vpop.f32.mrb[0].mxu0
        %1079 = vdwg.mxu0
        %1080 = vst.msk [vmem:[#allocation2 + $0x80] sm:$0xff] %vm399, %v1072
        %1081 = vst.msk [vmem:[#allocation2 + $0x88] sm:$0xff] %vm399, %v1077
        %v1082 = vld [vmem:[%s269 + $0x240] sm:$0xff]
        %v1083 = vld [vmem:[%s269 + $0x248] sm:$0xff]
        %v1084 = vld [vmem:[%s269 + $0x250] sm:$0xff]
        %v1085 = vld [vmem:[%s269 + $0x258] sm:$0xff]
        %v1086 = vld [vmem:[%s269 + $0x260] sm:$0xff]
        %v1087 = vld [vmem:[%s269 + $0x268] sm:$0xff]
        %v1088 = vld [vmem:[%s269 + $0x270] sm:$0xff]
        %v1089 = vld [vmem:[%s269 + $0x278] sm:$0xff]
        %1090 = vmatprep.subr.mxu0 0.0
        %1091 = vmatpush1.msra.mxu0 %v1082
        %1092 = vmatprep.subr.mxu0 0.0
        %1093 = vmatpush1.msra.mxu0 %v1083
        %1094 = vmatprep.subr.mxu0 0.0
        %1095 = vmatpush1.msra.mxu0 %v1084
        %1096 = vmatprep.subr.mxu0 0.0
        %1097 = vmatpush1.msra.mxu0 %v1085
        %1098 = vmatprep.subr.mxu0 0.0
        %1099 = vmatpush1.msra.mxu0 %v1086
        %1100 = vmatprep.subr.mxu0 0.0
        %1101 = vmatpush1.msra.mxu0 %v1087
        %1102 = vmatprep.subr.mxu0 0.0
        %1103 = vmatpush1.msra.mxu0 %v1088
        %1104 = vmatprep.subr.mxu0 0.0
        %1105 = vmatpush1.msra.mxu0 %v1089
        %1106 = vmatprep.subr.mxu0 0.0
        %1107 = vmatpush1.msra.mxu0 0.0
        %1108 = vmatprep.subr.mxu0 0.0
        %1109 = vmatpush1.msra.mxu0 0.0
        %1110 = vmatprep.subr.mxu0 0.0
        %1111 = vmatpush1.msra.mxu0 0.0
        %1112 = vmatprep.subr.mxu0 0.0
        %1113 = vmatpush1.msra.mxu0 0.0
        %1114 = vmatprep.subr.mxu0 0.0
        %1115 = vmatpush1.msra.mxu0 0.0
        %1116 = vmatprep.subr.mxu0 0.0
        %1117 = vmatpush1.msra.mxu0 0.0
        %1118 = vmatprep.subr.mxu0 0.0
        %1119 = vmatpush1.msra.mxu0 0.0
        %1120 = vmatprep.subr.mxu0 0.0
        %1121 = vmatpush1.msra.mxu0 0.0
        %1122 = vmatprep.subr.mxu0 0.0
        %1123 = vmatpush1.msra.mxu0 0.0
        %1124 = vmatprep.subr.mxu0 0.0
        %1125 = vmatpush1.msra.mxu0 0.0
        %1126 = vmatprep.subr.mxu0 0.0
        %1127 = vmatpush1.msra.mxu0 0.0
        %1128 = vmatprep.subr.mxu0 0.0
        %1129 = vmatpush1.msra.mxu0 0.0
        %1130 = vmatprep.subr.mxu0 0.0
        %1131 = vmatpush1.msra.mxu0 0.0
        %1132 = vmatprep.subr.mxu0 0.0
        %1133 = vmatpush1.msra.mxu0 0.0
        %1134 = vmatprep.subr.mxu0 0.0
        %1135 = vmatpush1.msra.mxu0 0.0
        %1136 = vmatprep.subr.mxu0 0.0
        %1137 = vmatpush1.msra.mxu0 0.0
        %1138 = vmatprep.subr.mxu0 0.0
        %1139 = vmatpush1.msra.mxu0 0.0
        %1140 = vmatprep.subr.mxu0 0.0
        %1141 = vmatpush1.msra.mxu0 0.0
        %1142 = vmatprep.subr.mxu0 0.0
        %1143 = vmatpush1.msra.mxu0 0.0
        %1144 = vmatprep.subr.mxu0 0.0
        %1145 = vmatpush1.msra.mxu0 0.0
        %1146 = vmatprep.subr.mxu0 0.0
        %1147 = vmatpush1.msra.mxu0 0.0
        %1148 = vmatprep.subr.mxu0 0.0
        %1149 = vmatpush1.msra.mxu0 0.0
        %1150 = vmatprep.subr.mxu0 0.0
        %1151 = vmatpush1.msra.mxu0 0.0
        %1152 = vmatprep.subr.mxu0 0.0
        %1153 = vmatpush1.msra.mxu0 0.0
        %1154 = vmatprep.mubr.f32.mxu0 0.0
        %1155 = vmatmul.mubr.f32.gmra.mrb[0].mxu0 %v319
        %v1156 = vpop.f32.mrb[0].mxu0
        %v1157 = vadd.f32 0.0, %v1156
        %v1158 = vpop.f32.mrb[0].mxu0
        %1159 = vmatprep.mubr.f32.mxu0 0.0
        %1160 = vmatmul.mubr.f32.gmra.mrb[0].mxu0 %v322
        %v1161 = vpop.f32.mrb[0].mxu0
        %v1162 = vadd.f32 0.0, %v1161
        %v1163 = vpop.f32.mrb[0].mxu0
        %1164 = vdwg.mxu0
        %1165 = vst.msk [vmem:[#allocation2 + $0x90] sm:$0xff] %vm399, %v1157
        %1166 = vst.msk [vmem:[#allocation2 + $0x98] sm:$0xff] %vm399, %v1162
        %v1167 = vld [vmem:[%s269 + $0x280] sm:$0xff]
        %v1168 = vld [vmem:[%s269 + $0x288] sm:$0xff]
        %v1169 = vld [vmem:[%s269 + $0x290] sm:$0xff]
        %v1170 = vld [vmem:[%s269 + $0x298] sm:$0xff]
        %v1171 = vld [vmem:[%s269 + $0x2a0] sm:$0xff]
        %v1172 = vld [vmem:[%s269 + $0x2a8] sm:$0xff]
        %v1173 = vld [vmem:[%s269 + $0x2b0] sm:$0xff]
        %v1174 = vld [vmem:[%s269 + $0x2b8] sm:$0xff]
        %1175 = vmatprep.subr.mxu0 0.0
        %1176 = vmatpush1.msra.mxu0 %v1167
        %1177 = vmatprep.subr.mxu0 0.0
        %1178 = vmatpush1.msra.mxu0 %v1168
        %1179 = vmatprep.subr.mxu0 0.0
        %1180 = vmatpush1.msra.mxu0 %v1169
        %1181 = vmatprep.subr.mxu0 0.0
        %1182 = vmatpush1.msra.mxu0 %v1170
        %1183 = vmatprep.subr.mxu0 0.0
        %1184 = vmatpush1.msra.mxu0 %v1171
        %1185 = vmatprep.subr.mxu0 0.0
        %1186 = vmatpush1.msra.mxu0 %v1172
        %1187 = vmatprep.subr.mxu0 0.0
        %1188 = vmatpush1.msra.mxu0 %v1173
        %1189 = vmatprep.subr.mxu0 0.0
        %1190 = vmatpush1.msra.mxu0 %v1174
        %1191 = vmatprep.subr.mxu0 0.0
        %1192 = vmatpush1.msra.mxu0 0.0
        %1193 = vmatprep.subr.mxu0 0.0
        %1194 = vmatpush1.msra.mxu0 0.0
        %1195 = vmatprep.subr.mxu0 0.0
        %1196 = vmatpush1.msra.mxu0 0.0
        %1197 = vmatprep.subr.mxu0 0.0
        %1198 = vmatpush1.msra.mxu0 0.0
        %1199 = vmatprep.subr.mxu0 0.0
        %1200 = vmatpush1.msra.mxu0 0.0
        %1201 = vmatprep.subr.mxu0 0.0
        %1202 = vmatpush1.msra.mxu0 0.0
        %1203 = vmatprep.subr.mxu0 0.0
        %1204 = vmatpush1.msra.mxu0 0.0
        %1205 = vmatprep.subr.mxu0 0.0
        %1206 = vmatpush1.msra.mxu0 0.0
        %1207 = vmatprep.subr.mxu0 0.0
        %1208 = vmatpush1.msra.mxu0 0.0
        %1209 = vmatprep.subr.mxu0 0.0
        %1210 = vmatpush1.msra.mxu0 0.0
        %1211 = vmatprep.subr.mxu0 0.0
        %1212 = vmatpush1.msra.mxu0 0.0
        %1213 = vmatprep.subr.mxu0 0.0
        %1214 = vmatpush1.msra.mxu0 0.0
        %1215 = vmatprep.subr.mxu0 0.0
        %1216 = vmatpush1.msra.mxu0 0.0
        %1217 = vmatprep.subr.mxu0 0.0
        %1218 = vmatpush1.msra.mxu0 0.0
        %1219 = vmatprep.subr.mxu0 0.0
        %1220 = vmatpush1.msra.mxu0 0.0
        %1221 = vmatprep.subr.mxu0 0.0
        %1222 = vmatpush1.msra.mxu0 0.0
        %1223 = vmatprep.subr.mxu0 0.0
        %1224 = vmatpush1.msra.mxu0 0.0
        %1225 = vmatprep.subr.mxu0 0.0
        %1226 = vmatpush1.msra.mxu0 0.0
        %1227 = vmatprep.subr.mxu0 0.0
        %1228 = vmatpush1.msra.mxu0 0.0
        %1229 = vmatprep.subr.mxu0 0.0
        %1230 = vmatpush1.msra.mxu0 0.0
        %1231 = vmatprep.subr.mxu0 0.0
        %1232 = vmatpush1.msra.mxu0 0.0
        %1233 = vmatprep.subr.mxu0 0.0
        %1234 = vmatpush1.msra.mxu0 0.0
        %1235 = vmatprep.subr.mxu0 0.0
        %1236 = vmatpush1.msra.mxu0 0.0
        %1237 = vmatprep.subr.mxu0 0.0
        %1238 = vmatpush1.msra.mxu0 0.0
        %1239 = vmatprep.mubr.f32.mxu0 0.0
        %1240 = vmatmul.mubr.f32.gmra.mrb[0].mxu0 %v319
        %v1241 = vpop.f32.mrb[0].mxu0
        %v1242 = vadd.f32 0.0, %v1241
        %v1243 = vpop.f32.mrb[0].mxu0
        %1244 = vmatprep.mubr.f32.mxu0 0.0
        %1245 = vmatmul.mubr.f32.gmra.mrb[0].mxu0 %v322
        %v1246 = vpop.f32.mrb[0].mxu0
        %v1247 = vadd.f32 0.0, %v1246
        %v1248 = vpop.f32.mrb[0].mxu0
        %1249 = vdwg.mxu0
        %1250 = vst.msk [vmem:[#allocation2 + $0xa0] sm:$0xff] %vm399, %v1242
        %1251 = vst.msk [vmem:[#allocation2 + $0xa8] sm:$0xff] %vm399, %v1247
        %v1252 = vld [vmem:[%s269 + $0x2c0] sm:$0xff]
        %v1253 = vld [vmem:[%s269 + $0x2c8] sm:$0xff]
        %v1254 = vld [vmem:[%s269 + $0x2d0] sm:$0xff]
        %v1255 = vld [vmem:[%s269 + $0x2d8] sm:$0xff]
        %v1256 = vld [vmem:[%s269 + $0x2e0] sm:$0xff]
        %v1257 = vld [vmem:[%s269 + $0x2e8] sm:$0xff]
        %v1258 = vld [vmem:[%s269 + $0x2f0] sm:$0xff]
        %v1259 = vld [vmem:[%s269 + $0x2f8] sm:$0xff]
        %1260 = vmatprep.subr.mxu0 0.0
        %1261 = vmatpush1.msra.mxu0 %v1252
        %1262 = vmatprep.subr.mxu0 0.0
        %1263 = vmatpush1.msra.mxu0 %v1253
        %1264 = vmatprep.subr.mxu0 0.0
        %1265 = vmatpush1.msra.mxu0 %v1254
        %1266 = vmatprep.subr.mxu0 0.0
        %1267 = vmatpush1.msra.mxu0 %v1255
        %1268 = vmatprep.subr.mxu0 0.0
        %1269 = vmatpush1.msra.mxu0 %v1256
        %1270 = vmatprep.subr.mxu0 0.0
        %1271 = vmatpush1.msra.mxu0 %v1257
        %1272 = vmatprep.subr.mxu0 0.0
        %1273 = vmatpush1.msra.mxu0 %v1258
        %1274 = vmatprep.subr.mxu0 0.0
        %1275 = vmatpush1.msra.mxu0 %v1259
        %1276 = vmatprep.subr.mxu0 0.0
        %1277 = vmatpush1.msra.mxu0 0.0
        %1278 = vmatprep.subr.mxu0 0.0
        %1279 = vmatpush1.msra.mxu0 0.0
        %1280 = vmatprep.subr.mxu0 0.0
        %1281 = vmatpush1.msra.mxu0 0.0
        %1282 = vmatprep.subr.mxu0 0.0
        %1283 = vmatpush1.msra.mxu0 0.0
        %1284 = vmatprep.subr.mxu0 0.0
        %1285 = vmatpush1.msra.mxu0 0.0
        %1286 = vmatprep.subr.mxu0 0.0
        %1287 = vmatpush1.msra.mxu0 0.0
        %1288 = vmatprep.subr.mxu0 0.0
        %1289 = vmatpush1.msra.mxu0 0.0
        %1290 = vmatprep.subr.mxu0 0.0
        %1291 = vmatpush1.msra.mxu0 0.0
        %1292 = vmatprep.subr.mxu0 0.0
        %1293 = vmatpush1.msra.mxu0 0.0
        %1294 = vmatprep.subr.mxu0 0.0
        %1295 = vmatpush1.msra.mxu0 0.0
        %1296 = vmatprep.subr.mxu0 0.0
        %1297 = vmatpush1.msra.mxu0 0.0
        %1298 = vmatprep.subr.mxu0 0.0
        %1299 = vmatpush1.msra.mxu0 0.0
        %1300 = vmatprep.subr.mxu0 0.0
        %1301 = vmatpush1.msra.mxu0 0.0
        %1302 = vmatprep.subr.mxu0 0.0
        %1303 = vmatpush1.msra.mxu0 0.0
        %1304 = vmatprep.subr.mxu0 0.0
        %1305 = vmatpush1.msra.mxu0 0.0
        %1306 = vmatprep.subr.mxu0 0.0
        %1307 = vmatpush1.msra.mxu0 0.0
        %1308 = vmatprep.subr.mxu0 0.0
        %1309 = vmatpush1.msra.mxu0 0.0
        %1310 = vmatprep.subr.mxu0 0.0
        %1311 = vmatpush1.msra.mxu0 0.0
        %1312 = vmatprep.subr.mxu0 0.0
        %1313 = vmatpush1.msra.mxu0 0.0
        %1314 = vmatprep.subr.mxu0 0.0
        %1315 = vmatpush1.msra.mxu0 0.0
        %1316 = vmatprep.subr.mxu0 0.0
        %1317 = vmatpush1.msra.mxu0 0.0
        %1318 = vmatprep.subr.mxu0 0.0
        %1319 = vmatpush1.msra.mxu0 0.0
        %1320 = vmatprep.subr.mxu0 0.0
        %1321 = vmatpush1.msra.mxu0 0.0
        %1322 = vmatprep.subr.mxu0 0.0
        %1323 = vmatpush1.msra.mxu0 0.0
        %1324 = vmatprep.mubr.f32.mxu0 0.0
        %1325 = vmatmul.mubr.f32.gmra.mrb[0].mxu0 %v319
        %v1326 = vpop.f32.mrb[0].mxu0
        %v1327 = vadd.f32 0.0, %v1326
        %v1328 = vpop.f32.mrb[0].mxu0
        %1329 = vmatprep.mubr.f32.mxu0 0.0
        %1330 = vmatmul.mubr.f32.gmra.mrb[0].mxu0 %v322
        %v1331 = vpop.f32.mrb[0].mxu0
        %v1332 = vadd.f32 0.0, %v1331
        %v1333 = vpop.f32.mrb[0].mxu0
        %1334 = vdwg.mxu0
        %1335 = vst.msk [vmem:[#allocation2 + $0xb0] sm:$0xff] %vm399, %v1327
        %1336 = vst.msk [vmem:[#allocation2 + $0xb8] sm:$0xff] %vm399, %v1332
        %v1337 = vld [vmem:[%s269 + $0x300] sm:$0xff]
        %v1338 = vld [vmem:[%s269 + $0x308] sm:$0xff]
        %v1339 = vld [vmem:[%s269 + $0x310] sm:$0xff]
        %v1340 = vld [vmem:[%s269 + $0x318] sm:$0xff]
        %v1341 = vld [vmem:[%s269 + $0x320] sm:$0xff]
        %v1342 = vld [vmem:[%s269 + $0x328] sm:$0xff]
        %v1343 = vld [vmem:[%s269 + $0x330] sm:$0xff]
        %v1344 = vld [vmem:[%s269 + $0x338] sm:$0xff]
        %1345 = vmatprep.subr.mxu0 0.0
        %1346 = vmatpush1.msra.mxu0 %v1337
        %1347 = vmatprep.subr.mxu0 0.0
        %1348 = vmatpush1.msra.mxu0 %v1338
        %1349 = vmatprep.subr.mxu0 0.0
        %1350 = vmatpush1.msra.mxu0 %v1339
        %1351 = vmatprep.subr.mxu0 0.0
        %1352 = vmatpush1.msra.mxu0 %v1340
        %1353 = vmatprep.subr.mxu0 0.0
        %1354 = vmatpush1.msra.mxu0 %v1341
        %1355 = vmatprep.subr.mxu0 0.0
        %1356 = vmatpush1.msra.mxu0 %v1342
        %1357 = vmatprep.subr.mxu0 0.0
        %1358 = vmatpush1.msra.mxu0 %v1343
        %1359 = vmatprep.subr.mxu0 0.0
        %1360 = vmatpush1.msra.mxu0 %v1344
        %1361 = vmatprep.subr.mxu0 0.0
        %1362 = vmatpush1.msra.mxu0 0.0
        %1363 = vmatprep.subr.mxu0 0.0
        %1364 = vmatpush1.msra.mxu0 0.0
        %1365 = vmatprep.subr.mxu0 0.0
        %1366 = vmatpush1.msra.mxu0 0.0
        %1367 = vmatprep.subr.mxu0 0.0
        %1368 = vmatpush1.msra.mxu0 0.0
        %1369 = vmatprep.subr.mxu0 0.0
        %1370 = vmatpush1.msra.mxu0 0.0
        %1371 = vmatprep.subr.mxu0 0.0
        %1372 = vmatpush1.msra.mxu0 0.0
        %1373 = vmatprep.subr.mxu0 0.0
        %1374 = vmatpush1.msra.mxu0 0.0
        %1375 = vmatprep.subr.mxu0 0.0
        %1376 = vmatpush1.msra.mxu0 0.0
        %1377 = vmatprep.subr.mxu0 0.0
        %1378 = vmatpush1.msra.mxu0 0.0
        %1379 = vmatprep.subr.mxu0 0.0
        %1380 = vmatpush1.msra.mxu0 0.0
        %1381 = vmatprep.subr.mxu0 0.0
        %1382 = vmatpush1.msra.mxu0 0.0
        %1383 = vmatprep.subr.mxu0 0.0
        %1384 = vmatpush1.msra.mxu0 0.0
        %1385 = vmatprep.subr.mxu0 0.0
        %1386 = vmatpush1.msra.mxu0 0.0
        %1387 = vmatprep.subr.mxu0 0.0
        %1388 = vmatpush1.msra.mxu0 0.0
        %1389 = vmatprep.subr.mxu0 0.0
        %1390 = vmatpush1.msra.mxu0 0.0
        %1391 = vmatprep.subr.mxu0 0.0
        %1392 = vmatpush1.msra.mxu0 0.0
        %1393 = vmatprep.subr.mxu0 0.0
        %1394 = vmatpush1.msra.mxu0 0.0
        %1395 = vmatprep.subr.mxu0 0.0
        %1396 = vmatpush1.msra.mxu0 0.0
        %1397 = vmatprep.subr.mxu0 0.0
        %1398 = vmatpush1.msra.mxu0 0.0
        %1399 = vmatprep.subr.mxu0 0.0
        %1400 = vmatpush1.msra.mxu0 0.0
        %1401 = vmatprep.subr.mxu0 0.0
        %1402 = vmatpush1.msra.mxu0 0.0
        %1403 = vmatprep.subr.mxu0 0.0
        %1404 = vmatpush1.msra.mxu0 0.0
        %1405 = vmatprep.subr.mxu0 0.0
        %1406 = vmatpush1.msra.mxu0 0.0
        %1407 = vmatprep.subr.mxu0 0.0
        %1408 = vmatpush1.msra.mxu0 0.0
        %1409 = vmatprep.mubr.f32.mxu0 0.0
        %1410 = vmatmul.mubr.f32.gmra.mrb[0].mxu0 %v319
        %v1411 = vpop.f32.mrb[0].mxu0
        %v1412 = vadd.f32 0.0, %v1411
        %v1413 = vpop.f32.mrb[0].mxu0
        %1414 = vmatprep.mubr.f32.mxu0 0.0
        %1415 = vmatmul.mubr.f32.gmra.mrb[0].mxu0 %v322
        %v1416 = vpop.f32.mrb[0].mxu0
        %v1417 = vadd.f32 0.0, %v1416
        %v1418 = vpop.f32.mrb[0].mxu0
        %1419 = vdwg.mxu0
        %1420 = vst.msk [vmem:[#allocation2 + $0xc0] sm:$0xff] %vm399, %v1412
        %1421 = vst.msk [vmem:[#allocation2 + $0xc8] sm:$0xff] %vm399, %v1417
        %v1422 = vld [vmem:[%s269 + $0x340] sm:$0xff]
        %v1423 = vld [vmem:[%s269 + $0x348] sm:$0xff]
        %v1424 = vld [vmem:[%s269 + $0x350] sm:$0xff]
        %v1425 = vld [vmem:[%s269 + $0x358] sm:$0xff]
        %v1426 = vld [vmem:[%s269 + $0x360] sm:$0xff]
        %v1427 = vld [vmem:[%s269 + $0x368] sm:$0xff]
        %v1428 = vld [vmem:[%s269 + $0x370] sm:$0xff]
        %v1429 = vld [vmem:[%s269 + $0x378] sm:$0xff]
        %1430 = vmatprep.subr.mxu0 0.0
        %1431 = vmatpush1.msra.mxu0 %v1422
        %1432 = vmatprep.subr.mxu0 0.0
        %1433 = vmatpush1.msra.mxu0 %v1423
        %1434 = vmatprep.subr.mxu0 0.0
        %1435 = vmatpush1.msra.mxu0 %v1424
        %1436 = vmatprep.subr.mxu0 0.0
        %1437 = vmatpush1.msra.mxu0 %v1425
        %1438 = vmatprep.subr.mxu0 0.0
        %1439 = vmatpush1.msra.mxu0 %v1426
        %1440 = vmatprep.subr.mxu0 0.0
        %1441 = vmatpush1.msra.mxu0 %v1427
        %1442 = vmatprep.subr.mxu0 0.0
        %1443 = vmatpush1.msra.mxu0 %v1428
        %1444 = vmatprep.subr.mxu0 0.0
        %1445 = vmatpush1.msra.mxu0 %v1429
        %1446 = vmatprep.subr.mxu0 0.0
        %1447 = vmatpush1.msra.mxu0 0.0
        %1448 = vmatprep.subr.mxu0 0.0
        %1449 = vmatpush1.msra.mxu0 0.0
        %1450 = vmatprep.subr.mxu0 0.0
        %1451 = vmatpush1.msra.mxu0 0.0
        %1452 = vmatprep.subr.mxu0 0.0
        %1453 = vmatpush1.msra.mxu0 0.0
        %1454 = vmatprep.subr.mxu0 0.0
        %1455 = vmatpush1.msra.mxu0 0.0
        %1456 = vmatprep.subr.mxu0 0.0
        %1457 = vmatpush1.msra.mxu0 0.0
        %1458 = vmatprep.subr.mxu0 0.0
        %1459 = vmatpush1.msra.mxu0 0.0
        %1460 = vmatprep.subr.mxu0 0.0
        %1461 = vmatpush1.msra.mxu0 0.0
        %1462 = vmatprep.subr.mxu0 0.0
        %1463 = vmatpush1.msra.mxu0 0.0
        %1464 = vmatprep.subr.mxu0 0.0
        %1465 = vmatpush1.msra.mxu0 0.0
        %1466 = vmatprep.subr.mxu0 0.0
        %1467 = vmatpush1.msra.mxu0 0.0
        %1468 = vmatprep.subr.mxu0 0.0
        %1469 = vmatpush1.msra.mxu0 0.0
        %1470 = vmatprep.subr.mxu0 0.0
        %1471 = vmatpush1.msra.mxu0 0.0
        %1472 = vmatprep.subr.mxu0 0.0
        %1473 = vmatpush1.msra.mxu0 0.0
        %1474 = vmatprep.subr.mxu0 0.0
        %1475 = vmatpush1.msra.mxu0 0.0
        %1476 = vmatprep.subr.mxu0 0.0
        %1477 = vmatpush1.msra.mxu0 0.0
        %1478 = vmatprep.subr.mxu0 0.0
        %1479 = vmatpush1.msra.mxu0 0.0
        %1480 = vmatprep.subr.mxu0 0.0
        %1481 = vmatpush1.msra.mxu0 0.0
        %1482 = vmatprep.subr.mxu0 0.0
        %1483 = vmatpush1.msra.mxu0 0.0
        %1484 = vmatprep.subr.mxu0 0.0
        %1485 = vmatpush1.msra.mxu0 0.0
        %1486 = vmatprep.subr.mxu0 0.0
        %1487 = vmatpush1.msra.mxu0 0.0
        %1488 = vmatprep.subr.mxu0 0.0
        %1489 = vmatpush1.msra.mxu0 0.0
        %1490 = vmatprep.subr.mxu0 0.0
        %1491 = vmatpush1.msra.mxu0 0.0
        %1492 = vmatprep.subr.mxu0 0.0
        %1493 = vmatpush1.msra.mxu0 0.0
        %1494 = vmatprep.mubr.f32.mxu0 0.0
        %1495 = vmatmul.mubr.f32.gmra.mrb[0].mxu0 %v319
        %v1496 = vpop.f32.mrb[0].mxu0
        %v1497 = vadd.f32 0.0, %v1496
        %v1498 = vpop.f32.mrb[0].mxu0
        %1499 = vmatprep.mubr.f32.mxu0 0.0
        %1500 = vmatmul.mubr.f32.gmra.mrb[0].mxu0 %v322
        %v1501 = vpop.f32.mrb[0].mxu0
        %v1502 = vadd.f32 0.0, %v1501
        %v1503 = vpop.f32.mrb[0].mxu0
        %1504 = vdwg.mxu0
        %1505 = vst.msk [vmem:[#allocation2 + $0xd0] sm:$0xff] %vm399, %v1497
        %1506 = vst.msk [vmem:[#allocation2 + $0xd8] sm:$0xff] %vm399, %v1502
        %v1507 = vld [vmem:[%s269 + $0x380] sm:$0xff]
        %v1508 = vld [vmem:[%s269 + $0x388] sm:$0xff]
        %v1509 = vld [vmem:[%s269 + $0x390] sm:$0xff]
        %v1510 = vld [vmem:[%s269 + $0x398] sm:$0xff]
        %v1511 = vld [vmem:[%s269 + $0x3a0] sm:$0xff]
        %v1512 = vld [vmem:[%s269 + $0x3a8] sm:$0xff]
        %v1513 = vld [vmem:[%s269 + $0x3b0] sm:$0xff]
        %v1514 = vld [vmem:[%s269 + $0x3b8] sm:$0xff]
        %1515 = vmatprep.subr.mxu0 0.0
        %1516 = vmatpush1.msra.mxu0 %v1507
        %1517 = vmatprep.subr.mxu0 0.0
        %1518 = vmatpush1.msra.mxu0 %v1508
        %1519 = vmatprep.subr.mxu0 0.0
        %1520 = vmatpush1.msra.mxu0 %v1509
        %1521 = vmatprep.subr.mxu0 0.0
        %1522 = vmatpush1.msra.mxu0 %v1510
        %1523 = vmatprep.subr.mxu0 0.0
        %1524 = vmatpush1.msra.mxu0 %v1511
        %1525 = vmatprep.subr.mxu0 0.0
        %1526 = vmatpush1.msra.mxu0 %v1512
        %1527 = vmatprep.subr.mxu0 0.0
        %1528 = vmatpush1.msra.mxu0 %v1513
        %1529 = vmatprep.subr.mxu0 0.0
        %1530 = vmatpush1.msra.mxu0 %v1514
        %1531 = vmatprep.subr.mxu0 0.0
        %1532 = vmatpush1.msra.mxu0 0.0
        %1533 = vmatprep.subr.mxu0 0.0
        %1534 = vmatpush1.msra.mxu0 0.0
        %1535 = vmatprep.subr.mxu0 0.0
        %1536 = vmatpush1.msra.mxu0 0.0
        %1537 = vmatprep.subr.mxu0 0.0
        %1538 = vmatpush1.msra.mxu0 0.0
        %1539 = vmatprep.subr.mxu0 0.0
        %1540 = vmatpush1.msra.mxu0 0.0
        %1541 = vmatprep.subr.mxu0 0.0
        %1542 = vmatpush1.msra.mxu0 0.0
        %1543 = vmatprep.subr.mxu0 0.0
        %1544 = vmatpush1.msra.mxu0 0.0
        %1545 = vmatprep.subr.mxu0 0.0
        %1546 = vmatpush1.msra.mxu0 0.0
        %1547 = vmatprep.subr.mxu0 0.0
        %1548 = vmatpush1.msra.mxu0 0.0
        %1549 = vmatprep.subr.mxu0 0.0
        %1550 = vmatpush1.msra.mxu0 0.0
        %1551 = vmatprep.subr.mxu0 0.0
        %1552 = vmatpush1.msra.mxu0 0.0
        %1553 = vmatprep.subr.mxu0 0.0
        %1554 = vmatpush1.msra.mxu0 0.0
        %1555 = vmatprep.subr.mxu0 0.0
        %1556 = vmatpush1.msra.mxu0 0.0
        %1557 = vmatprep.subr.mxu0 0.0
        %1558 = vmatpush1.msra.mxu0 0.0
        %1559 = vmatprep.subr.mxu0 0.0
        %1560 = vmatpush1.msra.mxu0 0.0
        %1561 = vmatprep.subr.mxu0 0.0
        %1562 = vmatpush1.msra.mxu0 0.0
        %1563 = vmatprep.subr.mxu0 0.0
        %1564 = vmatpush1.msra.mxu0 0.0
        %1565 = vmatprep.subr.mxu0 0.0
        %1566 = vmatpush1.msra.mxu0 0.0
        %1567 = vmatprep.subr.mxu0 0.0
        %1568 = vmatpush1.msra.mxu0 0.0
        %1569 = vmatprep.subr.mxu0 0.0
        %1570 = vmatpush1.msra.mxu0 0.0
        %1571 = vmatprep.subr.mxu0 0.0
        %1572 = vmatpush1.msra.mxu0 0.0
        %1573 = vmatprep.subr.mxu0 0.0
        %1574 = vmatpush1.msra.mxu0 0.0
        %1575 = vmatprep.subr.mxu0 0.0
        %1576 = vmatpush1.msra.mxu0 0.0
        %1577 = vmatprep.subr.mxu0 0.0
        %1578 = vmatpush1.msra.mxu0 0.0
        %1579 = vmatprep.mubr.f32.mxu0 0.0
        %1580 = vmatmul.mubr.f32.gmra.mrb[0].mxu0 %v319
        %v1581 = vpop.f32.mrb[0].mxu0
        %v1582 = vadd.f32 0.0, %v1581
        %v1583 = vpop.f32.mrb[0].mxu0
        %1584 = vmatprep.mubr.f32.mxu0 0.0
        %1585 = vmatmul.mubr.f32.gmra.mrb[0].mxu0 %v322
        %v1586 = vpop.f32.mrb[0].mxu0
        %v1587 = vadd.f32 0.0, %v1586
        %v1588 = vpop.f32.mrb[0].mxu0
        %1589 = vdwg.mxu0
        %1590 = vst.msk [vmem:[#allocation2 + $0xe0] sm:$0xff] %vm399, %v1582
        %1591 = vst.msk [vmem:[#allocation2 + $0xe8] sm:$0xff] %vm399, %v1587
        %v1592 = vld [vmem:[%s269 + $0x3c0] sm:$0xff]
        %v1593 = vld [vmem:[%s269 + $0x3c8] sm:$0xff]
        %v1594 = vld [vmem:[%s269 + $0x3d0] sm:$0xff]
        %v1595 = vld [vmem:[%s269 + $0x3d8] sm:$0xff]
        %v1596 = vld [vmem:[%s269 + $0x3e0] sm:$0xff]
        %v1597 = vld [vmem:[%s269 + $0x3e8] sm:$0xff]
        %v1598 = vld [vmem:[%s269 + $0x3f0] sm:$0xff]
        %v1599 = vld [vmem:[%s269 + $0x3f8] sm:$0xff]
        %1600 = vmatprep.subr.mxu0 0.0
        %1601 = vmatpush1.msra.mxu0 %v1592
        %1602 = vmatprep.subr.mxu0 0.0
        %1603 = vmatpush1.msra.mxu0 %v1593
        %1604 = vmatprep.subr.mxu0 0.0
        %1605 = vmatpush1.msra.mxu0 %v1594
        %1606 = vmatprep.subr.mxu0 0.0
        %1607 = vmatpush1.msra.mxu0 %v1595
        %1608 = vmatprep.subr.mxu0 0.0
        %1609 = vmatpush1.msra.mxu0 %v1596
        %1610 = vmatprep.subr.mxu0 0.0
        %1611 = vmatpush1.msra.mxu0 %v1597
        %1612 = vmatprep.subr.mxu0 0.0
        %1613 = vmatpush1.msra.mxu0 %v1598
        %1614 = vmatprep.subr.mxu0 0.0
        %1615 = vmatpush1.msra.mxu0 %v1599
        %1616 = vmatprep.subr.mxu0 0.0
        %1617 = vmatpush1.msra.mxu0 0.0
        %1618 = vmatprep.subr.mxu0 0.0
        %1619 = vmatpush1.msra.mxu0 0.0
        %1620 = vmatprep.subr.mxu0 0.0
        %1621 = vmatpush1.msra.mxu0 0.0
        %1622 = vmatprep.subr.mxu0 0.0
        %1623 = vmatpush1.msra.mxu0 0.0
        %1624 = vmatprep.subr.mxu0 0.0
        %1625 = vmatpush1.msra.mxu0 0.0
        %1626 = vmatprep.subr.mxu0 0.0
        %1627 = vmatpush1.msra.mxu0 0.0
        %1628 = vmatprep.subr.mxu0 0.0
        %1629 = vmatpush1.msra.mxu0 0.0
        %1630 = vmatprep.subr.mxu0 0.0
        %1631 = vmatpush1.msra.mxu0 0.0
        %1632 = vmatprep.subr.mxu0 0.0
        %1633 = vmatpush1.msra.mxu0 0.0
        %1634 = vmatprep.subr.mxu0 0.0
        %1635 = vmatpush1.msra.mxu0 0.0
        %1636 = vmatprep.subr.mxu0 0.0
        %1637 = vmatpush1.msra.mxu0 0.0
        %1638 = vmatprep.subr.mxu0 0.0
        %1639 = vmatpush1.msra.mxu0 0.0
        %1640 = vmatprep.subr.mxu0 0.0
        %1641 = vmatpush1.msra.mxu0 0.0
        %1642 = vmatprep.subr.mxu0 0.0
        %1643 = vmatpush1.msra.mxu0 0.0
        %1644 = vmatprep.subr.mxu0 0.0
        %1645 = vmatpush1.msra.mxu0 0.0
        %1646 = vmatprep.subr.mxu0 0.0
        %1647 = vmatpush1.msra.mxu0 0.0
        %1648 = vmatprep.subr.mxu0 0.0
        %1649 = vmatpush1.msra.mxu0 0.0
        %1650 = vmatprep.subr.mxu0 0.0
        %1651 = vmatpush1.msra.mxu0 0.0
        %1652 = vmatprep.subr.mxu0 0.0
        %1653 = vmatpush1.msra.mxu0 0.0
        %1654 = vmatprep.subr.mxu0 0.0
        %1655 = vmatpush1.msra.mxu0 0.0
        %1656 = vmatprep.subr.mxu0 0.0
        %1657 = vmatpush1.msra.mxu0 0.0
        %1658 = vmatprep.subr.mxu0 0.0
        %1659 = vmatpush1.msra.mxu0 0.0
        %1660 = vmatprep.subr.mxu0 0.0
        %1661 = vmatpush1.msra.mxu0 0.0
        %1662 = vmatprep.subr.mxu0 0.0
        %1663 = vmatpush1.msra.mxu0 0.0
        %1664 = vmatprep.mubr.f32.mxu0 0.0
        %1665 = vmatmul.mubr.f32.gmra.mrb[0].mxu0 %v319
        %v1666 = vpop.f32.mrb[0].mxu0
        %v1667 = vadd.f32 0.0, %v1666
        %v1668 = vpop.f32.mrb[0].mxu0
        %1669 = vmatprep.mubr.f32.mxu0 0.0
        %1670 = vmatmul.mubr.f32.gmra.mrb[0].mxu0 %v322
        %v1671 = vpop.f32.mrb[0].mxu0
        %v1672 = vadd.f32 0.0, %v1671
        %v1673 = vpop.f32.mrb[0].mxu0
        %1674 = vdwg.mxu0
        %1675 = vst.msk [vmem:[#allocation2 + $0xf0] sm:$0xff] %vm399, %v1667
        %1676 = vst.msk [vmem:[#allocation2 + $0xf8] sm:$0xff] %vm399, %v1672
        %v1677 = vld [vmem:[#allocation2] sm:$0xff]
        %v1678 = vld [vmem:[#allocation2 + $0x8] sm:$0xff]
        %v1679 = vld [vmem:[#allocation2 + $0x10] sm:$0xff]
        %v1680 = vld [vmem:[#allocation2 + $0x18] sm:$0xff]
        %v1681 = vld [vmem:[#allocation2 + $0x20] sm:$0xff]
        %v1682 = vld [vmem:[#allocation2 + $0x28] sm:$0xff]
        %v1683 = vld [vmem:[#allocation2 + $0x30] sm:$0xff]
        %v1684 = vld [vmem:[#allocation2 + $0x38] sm:$0xff]
        %v1685 = vld [vmem:[#allocation2 + $0x40] sm:$0xff]
        %v1686 = vld [vmem:[#allocation2 + $0x48] sm:$0xff]
        %v1687 = vld [vmem:[#allocation2 + $0x50] sm:$0xff]
        %v1688 = vld [vmem:[#allocation2 + $0x58] sm:$0xff]
        %v1689 = vld [vmem:[#allocation2 + $0x60] sm:$0xff]
        %v1690 = vld [vmem:[#allocation2 + $0x68] sm:$0xff]
        %v1691 = vld [vmem:[#allocation2 + $0x70] sm:$0xff]
        %v1692 = vld [vmem:[#allocation2 + $0x78] sm:$0xff]
        %v1693 = vld [vmem:[#allocation2 + $0x80] sm:$0xff]
        %v1694 = vld [vmem:[#allocation2 + $0x88] sm:$0xff]
        %v1695 = vld [vmem:[#allocation2 + $0x90] sm:$0xff]
        %v1696 = vld [vmem:[#allocation2 + $0x98] sm:$0xff]
        %v1697 = vld [vmem:[#allocation2 + $0xa0] sm:$0xff]
        %v1698 = vld [vmem:[#allocation2 + $0xa8] sm:$0xff]
        %v1699 = vld [vmem:[#allocation2 + $0xb0] sm:$0xff]
        %v1700 = vld [vmem:[#allocation2 + $0xb8] sm:$0xff]
        %v1701 = vld [vmem:[#allocation2 + $0xc0] sm:$0xff]
        %v1702 = vld [vmem:[#allocation2 + $0xc8] sm:$0xff]
        %v1703 = vld [vmem:[#allocation2 + $0xd0] sm:$0xff]
        %v1704 = vld [vmem:[#allocation2 + $0xd8] sm:$0xff]
        %v1705 = vld [vmem:[#allocation2 + $0xe0] sm:$0xff]
        %v1706 = vld [vmem:[#allocation2 + $0xe8] sm:$0xff]
        %v1707 = vld [vmem:[#allocation2 + $0xf0] sm:$0xff]
        %v1708 = vld [vmem:[#allocation2 + $0xf8] sm:$0xff]
        %1710 = vset.pattern.permute.xlu0 0
        %1711 = vperm.xlu0 %1710, %v271
        %v1712 = vpop.permute.xlu0 %1711
        %1715 = vset.pattern.permute.xlu0 0
        %1716 = vperm.xlu0 %1715, %v272
        %v1717 = vpop.permute.xlu0 %1716
        %1720 = vset.pattern.permute.xlu0 0
        %1721 = vperm.xlu0 %1720, %v273
        %v1722 = vpop.permute.xlu0 %1721
        %1725 = vset.pattern.permute.xlu0 0
        %1726 = vperm.xlu0 %1725, %v274
        %v1727 = vpop.permute.xlu0 %1726
        %1730 = vset.pattern.permute.xlu0 0
        %1731 = vperm.xlu0 %1730, %v275
        %v1732 = vpop.permute.xlu0 %1731
        %1735 = vset.pattern.permute.xlu0 0
        %1736 = vperm.xlu0 %1735, %v276
        %v1737 = vpop.permute.xlu0 %1736
        %1740 = vset.pattern.permute.xlu0 0
        %1741 = vperm.xlu0 %1740, %v277
        %v1742 = vpop.permute.xlu0 %1741
        %1745 = vset.pattern.permute.xlu0 0
        %1746 = vperm.xlu0 %1745, %v278
        %v1747 = vpop.permute.xlu0 %1746
        %1750 = vset.pattern.permute.xlu0 0
        %1751 = vperm.xlu0 %1750, %v279
        %v1752 = vpop.permute.xlu0 %1751
        %1755 = vset.pattern.permute.xlu0 0
        %1756 = vperm.xlu0 %1755, %v280
        %v1757 = vpop.permute.xlu0 %1756
        %1760 = vset.pattern.permute.xlu0 0
        %1761 = vperm.xlu0 %1760, %v281
        %v1762 = vpop.permute.xlu0 %1761
        %1765 = vset.pattern.permute.xlu0 0
        %1766 = vperm.xlu0 %1765, %v282
        %v1767 = vpop.permute.xlu0 %1766
        %1770 = vset.pattern.permute.xlu0 0
        %1771 = vperm.xlu0 %1770, %v283
        %v1772 = vpop.permute.xlu0 %1771
        %1775 = vset.pattern.permute.xlu0 0
        %1776 = vperm.xlu0 %1775, %v284
        %v1777 = vpop.permute.xlu0 %1776
        %1780 = vset.pattern.permute.xlu0 0
        %1781 = vperm.xlu0 %1780, %v285
        %v1782 = vpop.permute.xlu0 %1781
        %1785 = vset.pattern.permute.xlu0 0
        %1786 = vperm.xlu0 %1785, %v286
        %v1787 = vpop.permute.xlu0 %1786
        %1790 = vset.pattern.permute.xlu0 0
        %1791 = vperm.xlu0 %1790, %v287
        %v1792 = vpop.permute.xlu0 %1791
        %1795 = vset.pattern.permute.xlu0 0
        %1796 = vperm.xlu0 %1795, %v288
        %v1797 = vpop.permute.xlu0 %1796
        %1800 = vset.pattern.permute.xlu0 0
        %1801 = vperm.xlu0 %1800, %v289
        %v1802 = vpop.permute.xlu0 %1801
        %1805 = vset.pattern.permute.xlu0 0
        %1806 = vperm.xlu0 %1805, %v290
        %v1807 = vpop.permute.xlu0 %1806
        %1810 = vset.pattern.permute.xlu0 0
        %1811 = vperm.xlu0 %1810, %v291
        %v1812 = vpop.permute.xlu0 %1811
        %1815 = vset.pattern.permute.xlu0 0
        %1816 = vperm.xlu0 %1815, %v292
        %v1817 = vpop.permute.xlu0 %1816
        %1820 = vset.pattern.permute.xlu0 0
        %1821 = vperm.xlu0 %1820, %v293
        %v1822 = vpop.permute.xlu0 %1821
        %1825 = vset.pattern.permute.xlu0 0
        %1826 = vperm.xlu0 %1825, %v294
        %v1827 = vpop.permute.xlu0 %1826
        %1830 = vset.pattern.permute.xlu0 0
        %1831 = vperm.xlu0 %1830, %v295
        %v1832 = vpop.permute.xlu0 %1831
        %1835 = vset.pattern.permute.xlu0 0
        %1836 = vperm.xlu0 %1835, %v296
        %v1837 = vpop.permute.xlu0 %1836
        %1840 = vset.pattern.permute.xlu0 0
        %1841 = vperm.xlu0 %1840, %v297
        %v1842 = vpop.permute.xlu0 %1841
        %1845 = vset.pattern.permute.xlu0 0
        %1846 = vperm.xlu0 %1845, %v298
        %v1847 = vpop.permute.xlu0 %1846
        %1850 = vset.pattern.permute.xlu0 0
        %1851 = vperm.xlu0 %1850, %v299
        %v1852 = vpop.permute.xlu0 %1851
        %1855 = vset.pattern.permute.xlu0 0
        %1856 = vperm.xlu0 %1855, %v300
        %v1857 = vpop.permute.xlu0 %1856
        %1860 = vset.pattern.permute.xlu0 0
        %1861 = vperm.xlu0 %1860, %v301
        %v1862 = vpop.permute.xlu0 %1861
        %1865 = vset.pattern.permute.xlu0 0
        %1866 = vperm.xlu0 %1865, %v302
        %v1867 = vpop.permute.xlu0 %1866
        %v1870 = vsel %vm399, %v1677, 0
        %v1873 = vsel %vm399, %v1678, 0
        %v1876 = vsel %vm399, %v1679, 0
        %v1879 = vsel %vm399, %v1680, 0
        %v1882 = vsel %vm399, %v1681, 0
        %v1885 = vsel %vm399, %v1682, 0
        %v1888 = vsel %vm399, %v1683, 0
        %v1891 = vsel %vm399, %v1684, 0
        %v1894 = vsel %vm399, %v1685, 0
        %v1897 = vsel %vm399, %v1686, 0
        %v1900 = vsel %vm399, %v1687, 0
        %v1903 = vsel %vm399, %v1688, 0
        %v1906 = vsel %vm399, %v1689, 0
        %v1909 = vsel %vm399, %v1690, 0
        %v1912 = vsel %vm399, %v1691, 0
        %v1915 = vsel %vm399, %v1692, 0
        %v1918 = vsel %vm399, %v1693, 0
        %v1921 = vsel %vm399, %v1694, 0
        %v1924 = vsel %vm399, %v1695, 0
        %v1927 = vsel %vm399, %v1696, 0
        %v1930 = vsel %vm399, %v1697, 0
        %v1933 = vsel %vm399, %v1698, 0
        %v1936 = vsel %vm399, %v1699, 0
        %v1939 = vsel %vm399, %v1700, 0
        %v1942 = vsel %vm399, %v1701, 0
        %v1945 = vsel %vm399, %v1702, 0
        %v1948 = vsel %vm399, %v1703, 0
        %v1951 = vsel %vm399, %v1704, 0
        %v1954 = vsel %vm399, %v1705, 0
        %v1957 = vsel %vm399, %v1706, 0
        %v1960 = vsel %vm399, %v1707, 0
        %v1963 = vsel %vm399, %v1708, 0
        %1965 = vmatprep.subr.mxu0 0.0
        %1966 = vmatpush1.msra.mxu0 %v305
        %1967 = vmatprep.subr.mxu0 0.0
        %1968 = vmatpush1.msra.mxu0 %v306
        %1969 = vmatprep.subr.mxu0 0.0
        %1970 = vmatpush1.msra.mxu0 %v307
        %1971 = vmatprep.subr.mxu0 0.0
        %1972 = vmatpush1.msra.mxu0 %v308
        %1973 = vmatprep.subr.mxu0 0.0
        %1974 = vmatpush1.msra.mxu0 0.0
        %1975 = vmatprep.subr.mxu0 0.0
        %1976 = vmatpush1.msra.mxu0 0.0
        %1977 = vmatprep.subr.mxu0 0.0
        %1978 = vmatpush1.msra.mxu0 0.0
        %1979 = vmatprep.subr.mxu0 0.0
        %1980 = vmatpush1.msra.mxu0 0.0
        %1981 = vmatprep.subr.mxu0 0.0
        %1982 = vmatpush1.msra.mxu0 0.0
        %1983 = vmatprep.subr.mxu0 0.0
        %1984 = vmatpush1.msra.mxu0 0.0
        %1985 = vmatprep.subr.mxu0 0.0
        %1986 = vmatpush1.msra.mxu0 0.0
        %1987 = vmatprep.subr.mxu0 0.0
        %1988 = vmatpush1.msra.mxu0 0.0
        %1989 = vmatprep.subr.mxu0 0.0
        %1990 = vmatpush1.msra.mxu0 0.0
        %1991 = vmatprep.subr.mxu0 0.0
        %1992 = vmatpush1.msra.mxu0 0.0
        %1993 = vmatprep.subr.mxu0 0.0
        %1994 = vmatpush1.msra.mxu0 0.0
        %1995 = vmatprep.subr.mxu0 0.0
        %1996 = vmatpush1.msra.mxu0 0.0
        %1997 = vmatprep.subr.mxu0 0.0
        %1998 = vmatpush1.msra.mxu0 0.0
        %1999 = vmatprep.subr.mxu0 0.0
        %2000 = vmatpush1.msra.mxu0 0.0
        %2001 = vmatprep.subr.mxu0 0.0
        %2002 = vmatpush1.msra.mxu0 0.0
        %2003 = vmatprep.subr.mxu0 0.0
        %2004 = vmatpush1.msra.mxu0 0.0
        %2005 = vmatprep.subr.mxu0 0.0
        %2006 = vmatpush1.msra.mxu0 0.0
        %2007 = vmatprep.subr.mxu0 0.0
        %2008 = vmatpush1.msra.mxu0 0.0
        %2009 = vmatprep.subr.mxu0 0.0
        %2010 = vmatpush1.msra.mxu0 0.0
        %2011 = vmatprep.subr.mxu0 0.0
        %2012 = vmatpush1.msra.mxu0 0.0
        %2013 = vmatprep.subr.mxu0 0.0
        %2014 = vmatpush1.msra.mxu0 0.0
        %2015 = vmatprep.subr.mxu0 0.0
        %2016 = vmatpush1.msra.mxu0 0.0
        %2017 = vmatprep.subr.mxu0 0.0
        %2018 = vmatpush1.msra.mxu0 0.0
        %2019 = vmatprep.subr.mxu0 0.0
        %2020 = vmatpush1.msra.mxu0 0.0
        %2021 = vmatprep.subr.mxu0 0.0
        %2022 = vmatpush1.msra.mxu0 0.0
        %2023 = vmatprep.subr.mxu0 0.0
        %2024 = vmatpush1.msra.mxu0 0.0
        %2025 = vmatprep.subr.mxu0 0.0
        %2026 = vmatpush1.msra.mxu0 0.0
        %2027 = vmatprep.subr.mxu0 0.0
        %2028 = vmatpush1.msra.mxu0 0.0
        %2029 = vmatprep.mubr.f32.mxu0 0.0
        %2030 = vmatmul.mubr.f32.gmra.mrb[0].mxu0 %v1870
        %v2031 = vpop.f32.mrb[0].mxu0
        %v2032 = vadd.f32 %v1712, %v2031
        %v2033 = vpop.f32.mrb[0].mxu0
        %2034 = vmatprep.mubr.f32.mxu0 0.0
        %2035 = vmatmul.mubr.f32.gmra.mrb[0].mxu0 %v1873
        %v2036 = vpop.f32.mrb[0].mxu0
        %v2037 = vadd.f32 %v1717, %v2036
        %v2038 = vpop.f32.mrb[0].mxu0
        %2039 = vmatprep.mubr.f32.mxu0 0.0
        %2040 = vmatmul.mubr.f32.gmra.mrb[0].mxu0 %v1876
        %v2041 = vpop.f32.mrb[0].mxu0
        %v2042 = vadd.f32 %v1722, %v2041
        %v2043 = vpop.f32.mrb[0].mxu0
        %2044 = vmatprep.mubr.f32.mxu0 0.0
        %2045 = vmatmul.mubr.f32.gmra.mrb[0].mxu0 %v1879
        %v2046 = vpop.f32.mrb[0].mxu0
        %v2047 = vadd.f32 %v1727, %v2046
        %v2048 = vpop.f32.mrb[0].mxu0
        %2049 = vmatprep.mubr.f32.mxu0 0.0
        %2050 = vmatmul.mubr.f32.gmra.mrb[0].mxu0 %v1882
        %v2051 = vpop.f32.mrb[0].mxu0
        %v2052 = vadd.f32 %v1732, %v2051
        %v2053 = vpop.f32.mrb[0].mxu0
        %2054 = vmatprep.mubr.f32.mxu0 0.0
        %2055 = vmatmul.mubr.f32.gmra.mrb[0].mxu0 %v1885
        %v2056 = vpop.f32.mrb[0].mxu0
        %v2057 = vadd.f32 %v1737, %v2056
        %v2058 = vpop.f32.mrb[0].mxu0
        %2059 = vmatprep.mubr.f32.mxu0 0.0
        %2060 = vmatmul.mubr.f32.gmra.mrb[0].mxu0 %v1888
        %v2061 = vpop.f32.mrb[0].mxu0
        %v2062 = vadd.f32 %v1742, %v2061
        %v2063 = vpop.f32.mrb[0].mxu0
        %2064 = vmatprep.mubr.f32.mxu0 0.0
        %2065 = vmatmul.mubr.f32.gmra.mrb[0].mxu0 %v1891
        %v2066 = vpop.f32.mrb[0].mxu0
        %v2067 = vadd.f32 %v1747, %v2066
        %v2068 = vpop.f32.mrb[0].mxu0
        %2069 = vmatprep.mubr.f32.mxu0 0.0
        %2070 = vmatmul.mubr.f32.gmra.mrb[0].mxu0 %v1894
        %v2071 = vpop.f32.mrb[0].mxu0
        %v2072 = vadd.f32 %v1752, %v2071
        %v2073 = vpop.f32.mrb[0].mxu0
        %2074 = vmatprep.mubr.f32.mxu0 0.0
        %2075 = vmatmul.mubr.f32.gmra.mrb[0].mxu0 %v1897
        %v2076 = vpop.f32.mrb[0].mxu0
        %v2077 = vadd.f32 %v1757, %v2076
        %v2078 = vpop.f32.mrb[0].mxu0
        %2079 = vmatprep.mubr.f32.mxu0 0.0
        %2080 = vmatmul.mubr.f32.gmra.mrb[0].mxu0 %v1900
        %v2081 = vpop.f32.mrb[0].mxu0
        %v2082 = vadd.f32 %v1762, %v2081
        %v2083 = vpop.f32.mrb[0].mxu0
        %2084 = vmatprep.mubr.f32.mxu0 0.0
        %2085 = vmatmul.mubr.f32.gmra.mrb[0].mxu0 %v1903
        %v2086 = vpop.f32.mrb[0].mxu0
        %v2087 = vadd.f32 %v1767, %v2086
        %v2088 = vpop.f32.mrb[0].mxu0
        %2089 = vmatprep.mubr.f32.mxu0 0.0
        %2090 = vmatmul.mubr.f32.gmra.mrb[0].mxu0 %v1906
        %v2091 = vpop.f32.mrb[0].mxu0
        %v2092 = vadd.f32 %v1772, %v2091
        %v2093 = vpop.f32.mrb[0].mxu0
        %2094 = vmatprep.mubr.f32.mxu0 0.0
        %2095 = vmatmul.mubr.f32.gmra.mrb[0].mxu0 %v1909
        %v2096 = vpop.f32.mrb[0].mxu0
        %v2097 = vadd.f32 %v1777, %v2096
        %v2098 = vpop.f32.mrb[0].mxu0
        %2099 = vmatprep.mubr.f32.mxu0 0.0
        %2100 = vmatmul.mubr.f32.gmra.mrb[0].mxu0 %v1912
        %v2101 = vpop.f32.mrb[0].mxu0
        %v2102 = vadd.f32 %v1782, %v2101
        %v2103 = vpop.f32.mrb[0].mxu0
        %2104 = vmatprep.mubr.f32.mxu0 0.0
        %2105 = vmatmul.mubr.f32.gmra.mrb[0].mxu0 %v1915
        %v2106 = vpop.f32.mrb[0].mxu0
        %v2107 = vadd.f32 %v1787, %v2106
        %v2108 = vpop.f32.mrb[0].mxu0
        %2109 = vmatprep.mubr.f32.mxu0 0.0
        %2110 = vmatmul.mubr.f32.gmra.mrb[0].mxu0 %v1918
        %v2111 = vpop.f32.mrb[0].mxu0
        %v2112 = vadd.f32 %v1792, %v2111
        %v2113 = vpop.f32.mrb[0].mxu0
        %2114 = vmatprep.mubr.f32.mxu0 0.0
        %2115 = vmatmul.mubr.f32.gmra.mrb[0].mxu0 %v1921
        %v2116 = vpop.f32.mrb[0].mxu0
        %v2117 = vadd.f32 %v1797, %v2116
        %v2118 = vpop.f32.mrb[0].mxu0
        %2119 = vmatprep.mubr.f32.mxu0 0.0
        %2120 = vmatmul.mubr.f32.gmra.mrb[0].mxu0 %v1924
        %v2121 = vpop.f32.mrb[0].mxu0
        %v2122 = vadd.f32 %v1802, %v2121
        %v2123 = vpop.f32.mrb[0].mxu0
        %2124 = vmatprep.mubr.f32.mxu0 0.0
        %2125 = vmatmul.mubr.f32.gmra.mrb[0].mxu0 %v1927
        %v2126 = vpop.f32.mrb[0].mxu0
        %v2127 = vadd.f32 %v1807, %v2126
        %v2128 = vpop.f32.mrb[0].mxu0
        %2129 = vmatprep.mubr.f32.mxu0 0.0
        %2130 = vmatmul.mubr.f32.gmra.mrb[0].mxu0 %v1930
        %v2131 = vpop.f32.mrb[0].mxu0
        %v2132 = vadd.f32 %v1812, %v2131
        %v2133 = vpop.f32.mrb[0].mxu0
        %2134 = vmatprep.mubr.f32.mxu0 0.0
        %2135 = vmatmul.mubr.f32.gmra.mrb[0].mxu0 %v1933
        %v2136 = vpop.f32.mrb[0].mxu0
        %v2137 = vadd.f32 %v1817, %v2136
        %v2138 = vpop.f32.mrb[0].mxu0
        %2139 = vmatprep.mubr.f32.mxu0 0.0
        %2140 = vmatmul.mubr.f32.gmra.mrb[0].mxu0 %v1936
        %v2141 = vpop.f32.mrb[0].mxu0
        %v2142 = vadd.f32 %v1822, %v2141
        %v2143 = vpop.f32.mrb[0].mxu0
        %2144 = vmatprep.mubr.f32.mxu0 0.0
        %2145 = vmatmul.mubr.f32.gmra.mrb[0].mxu0 %v1939
        %v2146 = vpop.f32.mrb[0].mxu0
        %v2147 = vadd.f32 %v1827, %v2146
        %v2148 = vpop.f32.mrb[0].mxu0
        %2149 = vmatprep.mubr.f32.mxu0 0.0
        %2150 = vmatmul.mubr.f32.gmra.mrb[0].mxu0 %v1942
        %v2151 = vpop.f32.mrb[0].mxu0
        %v2152 = vadd.f32 %v1832, %v2151
        %v2153 = vpop.f32.mrb[0].mxu0
        %2154 = vmatprep.mubr.f32.mxu0 0.0
        %2155 = vmatmul.mubr.f32.gmra.mrb[0].mxu0 %v1945
        %v2156 = vpop.f32.mrb[0].mxu0
        %v2157 = vadd.f32 %v1837, %v2156
        %v2158 = vpop.f32.mrb[0].mxu0
        %2159 = vmatprep.mubr.f32.mxu0 0.0
        %2160 = vmatmul.mubr.f32.gmra.mrb[0].mxu0 %v1948
        %v2161 = vpop.f32.mrb[0].mxu0
        %v2162 = vadd.f32 %v1842, %v2161
        %v2163 = vpop.f32.mrb[0].mxu0
        %2164 = vmatprep.mubr.f32.mxu0 0.0
        %2165 = vmatmul.mubr.f32.gmra.mrb[0].mxu0 %v1951
        %v2166 = vpop.f32.mrb[0].mxu0
        %v2167 = vadd.f32 %v1847, %v2166
        %v2168 = vpop.f32.mrb[0].mxu0
        %2169 = vmatprep.mubr.f32.mxu0 0.0
        %2170 = vmatmul.mubr.f32.gmra.mrb[0].mxu0 %v1954
        %v2171 = vpop.f32.mrb[0].mxu0
        %v2172 = vadd.f32 %v1852, %v2171
        %v2173 = vpop.f32.mrb[0].mxu0
        %2174 = vmatprep.mubr.f32.mxu0 0.0
        %2175 = vmatmul.mubr.f32.gmra.mrb[0].mxu0 %v1957
        %v2176 = vpop.f32.mrb[0].mxu0
        %v2177 = vadd.f32 %v1857, %v2176
        %v2178 = vpop.f32.mrb[0].mxu0
        %2179 = vmatprep.mubr.f32.mxu0 0.0
        %2180 = vmatmul.mubr.f32.gmra.mrb[0].mxu0 %v1960
        %v2181 = vpop.f32.mrb[0].mxu0
        %v2182 = vadd.f32 %v1862, %v2181
        %v2183 = vpop.f32.mrb[0].mxu0
        %2184 = vmatprep.mubr.f32.mxu0 0.0
        %2185 = vmatmul.mubr.f32.gmra.mrb[0].mxu0 %v1963
        %v2186 = vpop.f32.mrb[0].mxu0
        %v2187 = vadd.f32 %v1867, %v2186
        %v2188 = vpop.f32.mrb[0].mxu0
        %2189 = vdwg.mxu0
        %2190 = vst [vmem:[%s249] sm:$0xff] %v2032
        %2191 = vst [vmem:[%s249 + $0x8] sm:$0xff] %v2037
        %2192 = vst [vmem:[%s249 + $0x10] sm:$0xff] %v2042
        %2193 = vst [vmem:[%s249 + $0x18] sm:$0xff] %v2047
        %2194 = vst [vmem:[%s249 + $0x20] sm:$0xff] %v2052
        %2195 = vst [vmem:[%s249 + $0x28] sm:$0xff] %v2057
        %2196 = vst [vmem:[%s249 + $0x30] sm:$0xff] %v2062
        %2197 = vst [vmem:[%s249 + $0x38] sm:$0xff] %v2067
        %2198 = vst [vmem:[%s249 + $0x40] sm:$0xff] %v2072
        %2199 = vst [vmem:[%s249 + $0x48] sm:$0xff] %v2077
        %2200 = vst [vmem:[%s249 + $0x50] sm:$0xff] %v2082
        %2201 = vst [vmem:[%s249 + $0x58] sm:$0xff] %v2087
        %2202 = vst [vmem:[%s249 + $0x60] sm:$0xff] %v2092
        %2203 = vst [vmem:[%s249 + $0x68] sm:$0xff] %v2097
        %2204 = vst [vmem:[%s249 + $0x70] sm:$0xff] %v2102
        %2205 = vst [vmem:[%s249 + $0x78] sm:$0xff] %v2107
        %2206 = vst [vmem:[%s249 + $0x80] sm:$0xff] %v2112
        %2207 = vst [vmem:[%s249 + $0x88] sm:$0xff] %v2117
        %2208 = vst [vmem:[%s249 + $0x90] sm:$0xff] %v2122
        %2209 = vst [vmem:[%s249 + $0x98] sm:$0xff] %v2127
        %2210 = vst [vmem:[%s249 + $0xa0] sm:$0xff] %v2132
        %2211 = vst [vmem:[%s249 + $0xa8] sm:$0xff] %v2137
        %2212 = vst [vmem:[%s249 + $0xb0] sm:$0xff] %v2142
        %2213 = vst [vmem:[%s249 + $0xb8] sm:$0xff] %v2147
        %2214 = vst [vmem:[%s249 + $0xc0] sm:$0xff] %v2152
        %2215 = vst [vmem:[%s249 + $0xc8] sm:$0xff] %v2157
        %2216 = vst [vmem:[%s249 + $0xd0] sm:$0xff] %v2162
        %2217 = vst [vmem:[%s249 + $0xd8] sm:$0xff] %v2167
        %2218 = vst [vmem:[%s249 + $0xe0] sm:$0xff] %v2172
        %2219 = vst [vmem:[%s249 + $0xe8] sm:$0xff] %v2177
        %2220 = vst [vmem:[%s249 + $0xf0] sm:$0xff] %v2182
        %2221 = vst [vmem:[%s249 + $0xf8] sm:$0xff] %v2187
        %s2222 = sand.u32 %s144, 1
        %s2223 = scalar_lea.sflag [#allocation4], %s2222
        %s2224 = sand.u32 %s144, 1
        %s2225 = smul.addr %s2224, 256
        %s2226 = scalar_lea.vmem [#allocation3], %s2225
        // Predicated region
        $region37: #{tpu_custom_call.1} parent=35 // pred_check
          %p2227 = pneg %p154
        $region38: #{tpu_custom_call.1} parent=35 // pred_check_branch
          %2229 = sbr.rel (%p2227) target = $region40
        $region39: #{tpu_custom_call.1} parent=35 // pred_region
          %s2230 = smul.u32 32, %s22
          %s2232 = ssub.s32 4096, 4096
          %2233 = vsyncadd %s2223, %s2232
          %s2234 = smul.addr %s23, 32
          %s2235 = sadd.s32 %s2230, %s2234
          %s2236 = smul.addr %s2235, 128
          %s2237 = scalar_lea.hbm %s4, %s2236
          %s2238 = sshll.u32 %s2226, 4
          %s2239 = int_to_ptr.vmem [resolvable:$true] %s2238
          %2244 = dma.vmem_to_hbm [thread:$0]  %s2239, 4096, %s2237, %s2223, 128, 128, 8
        $region40: #{tpu_custom_call.1} parent=35 // pred_fallthru
          _
      $region36: #{tpu_custom_call.1} parent=5 // pred_fallthru
        _
      %p2245 = scmp.le.s32.totalorder 2, %s13
      // Predicated region
      $region41: #{tpu_custom_call.1} parent=5 // pred_check
        %p2246 = pneg %p2245
      $region42: #{tpu_custom_call.1} parent=5 // pred_check_branch
        %2248 = sbr.rel (%p2246) target = $region44
      $region43: #{tpu_custom_call.1} parent=5 // pred_region
        %s2249 = ssub.s32 %s13, 2
        // Predicated region
        $region45: #{tpu_custom_call.1} parent=43 // pred_check
          %p2250 = pneg %p160
        $region46: #{tpu_custom_call.1} parent=43 // pred_check_branch
          %2252 = sbr.rel (%p2250) target = $region48
        $region47: #{tpu_custom_call.1} parent=43 // pred_region
          %s2253 = sand.u32 %s145, 1
          %s2254 = scalar_lea.sflag [#allocation4], %s2253
          %s2255 = sand.u32 %s145, 1
          %s2256 = smul.addr %s2255, 256
          %s2257 = scalar_lea.vmem [#allocation3], %s2256
          %2258 = dma.done %s2254, 4096
        $region48: #{tpu_custom_call.1} parent=43 // pred_fallthru
          _
      $region44: #{tpu_custom_call.1} parent=5 // pred_fallthru
        _
    $region6: #{tpu_custom_call.1} parent=1 // loop_footer
      %s17 = sadd.s32 1, %s13
    $region7: #{tpu_custom_call.1} parent=1 // loop_footer_branch
      %12 = sbr.rel target = $region3
    $region8: #{tpu_custom_call.1} parent=1 // loop_exit
      _
    %2259 = vsyncpa [#allocation4], 1
    %s2260 = scalar_lea.sflag [#allocation4], 1
    %2261 = vsyncpa %s2260, 1

</llo_original>
